<compile_context>
chip_gen: v5e
topology: v5e:2x2
jax: 0.10.0
libtpu: 0.0.40
codegen_flags: <defaults>
</compile_context>

<pallas_src>
import jax
import jax.numpy as jnp
from jax.experimental import pallas as pl
from jax.experimental.pallas import tpu as pltpu

# ---------------- model dimensions (small, consistent with the module) ----------------
BATCH = 2
SEQ = 8                     # temporal context length (dim=1 in apply_backbone)
FEAT = 32                   # per-timestep feature dim fed to the frozen backbone
BB_OUT = 48                 # backbone_final_length
EMBED = 32                  # embed_dim
D_STATE = 16
D_CONV = 4
EXPAND = 2
D_INNER = EXPAND * EMBED    # 64
DT_RANK = max(1, -(-EMBED // 16))   # ceil(embed_dim / 16) = 2
N_CLASSES = 5
BN_EPS = 1e-5
BT = BATCH * SEQ


# ---------------- shared math helpers -----------------------------------------------
def _sigmoid(x):
    return 1.0 / (1.0 + jnp.exp(-x))


def _softplus(x):
    # matches torch.nn.functional.softplus(beta=1, threshold=20)
    return jnp.where(x > 20.0, x, jnp.log(1.0 + jnp.exp(x)))


def _elu(x):
    return jnp.where(x > 0.0, x, jnp.exp(x) - 1.0)


# ---------------- single fused kernel: (backbone+embed) + Mamba + fc ------------------
def fused_kernel(x_ref, wbw1_ref, bbw1_ref, bns_ref, bnt_ref, w2win_ref, b2win_ref,
                 convw_ref, convb_ref, wxp_ref, bdt_ref, nega_ref, dparam_ref,
                 woutfc_ref, bfc_ref, o_ref):
    # ---- frozen backbone proxy + embed Linear-1 folded into ONE matmul (host fold) ----
    x = x_ref[...]                                                       # (BT, FEAT)
    e = jnp.dot(x, wbw1_ref[...], preferred_element_type=jnp.float32) + bbw1_ref[...]
    a = _elu(e * bns_ref[...] + bnt_ref[...])          # BatchNorm1d(eval) folded to affine

    # ---- embed Linear-2 folded into Mamba in_proj (x|z): one lane-dense 32->128 matmul ----
    xz = jnp.dot(a, w2win_ref[...], preferred_element_type=jnp.float32) + b2win_ref[...]
    x_in = xz[:, :D_INNER]                                               # (BT, D_INNER)
    z = xz[:, D_INNER:]                                                  # (BT, D_INNER)

    # ---- causal depthwise conv1d (kernel D_CONV) + SiLU ----
    # sublane roll (XLU) + within-batch mask; wrapped / cross-batch rows are masked to zero.
    convw = convw_ref[...]                                               # (D_CONV, D_INNER)
    tmod = jax.lax.broadcasted_iota(jnp.int32, (BT, D_INNER), 0) % SEQ   # time-within-batch
    conv = convb_ref[...] + x_in * convw[D_CONV - 1:D_CONV, :]           # shift-0 tap
    for s in range(1, D_CONV):                                           # shifts 1, 2, 3
        k = D_CONV - 1 - s
        shifted = pltpu.roll(x_in, shift=s, axis=0)                      # shifted[r] = x_in[r - s]
        shifted = jnp.where(tmod >= s, shifted, 0.0)                     # no cross-batch leakage
        conv = conv + shifted * convw[k:k + 1, :]
    x_act = conv * _sigmoid(conv)                                        # SiLU, (BT, D_INNER)

    # ---- fused x_proj: [ (wx_dt @ wdt) | wx_b | wx_c ] in a single matmul ----
    proj = jnp.dot(x_act, wxp_ref[...], preferred_element_type=jnp.float32)  # (BT, D_INNER+2*N)
    delta = _softplus(proj[:, :D_INNER] + bdt_ref[...])                  # (BT, D_INNER)
    Bm = proj[:, D_INNER:D_INNER + D_STATE]                              # (BT, D_STATE)
    Cm = proj[:, D_INNER + D_STATE:]                                     # (BT, D_STATE)

    # ---- batch-parallel selective scan: SEQ=8 steps, carried h (B, N, D) ----
    nega = nega_ref[...]                                                 # (D_STATE, D_INNER)
    dx = delta * x_act                                                   # (BT, D_INNER)
    delta_b = delta.reshape(BATCH, SEQ, D_INNER)
    dx_b = dx.reshape(BATCH, SEQ, D_INNER)
    Bm_b = Bm.reshape(BATCH, SEQ, D_STATE)
    Cm_b = Cm.reshape(BATCH, SEQ, D_STATE)

    h_st = jnp.zeros((BATCH, D_STATE, D_INNER), jnp.float32)
    ys = []
    for t in range(SEQ):                                                 # fully unrolled, 8 steps
        dA_t = jnp.exp(delta_b[:, t, :][:, None, :] * nega[None, :, :])  # (B, N, D), EUP exp
        dBu_t = Bm_b[:, t, :][:, :, None] * dx_b[:, t, :][:, None, :]    # (B, N, D)
        h_st = dA_t * h_st + dBu_t
        # C-contraction as VPU multiply + sublane reduce (no per-step MXU round-trip)
        ys.append(jnp.sum(Cm_b[:, t, :][:, :, None] * h_st, axis=1))     # (B, D_INNER)
    y = jnp.stack(ys, axis=1).reshape(BT, D_INNER)                       # (BT, D_INNER)

    # ---- D skip, SiLU(z) gate, fused out_proj + fc head ----
    y = y + x_act * dparam_ref[...]
    y = y * (z * _sigmoid(z))
    o_ref[...] = jnp.dot(y, woutfc_ref[...], preferred_element_type=jnp.float32) + bfc_ref[...]


# ---------------- host-side weight folding (pure algebra, same math) ------------------
def fuse_params(p):
    s = p['gamma'] / jnp.sqrt(p['rv'] + BN_EPS)                 # BN eval-mode affine
    win = jnp.concatenate([p['win_x'], p['win_z']], axis=1)     # (EMBED, 2*D_INNER)
    return {
        'wbw1': p['wb'] @ p['w1'],                              # backbone folded into embed L1
        'bbw1': p['bb'] @ p['w1'] + p['b1'],
        'bns': s, 'bnt': p['beta'] - p['rm'] * s,
        'w2win': p['w2'] @ win,                                 # embed L2 folded into in_proj
        'b2win': p['b2'] @ win,
        'conv_w': p['conv_w'], 'conv_b': p['conv_b'],
        'wxp': jnp.concatenate([p['wx_dt'] @ p['wdt'], p['wx_b'], p['wx_c']], axis=1),
        'bdt': p['bdt'],
        'nega': -jnp.exp(p['alog_t']),                          # (D_STATE, D_INNER)
        'dparam': p['dparam'],
        'woutfc': p['wout'] @ p['wfc'],                         # out_proj folded with fc head
        'bfc': p['bfc'],
    }


_FUSED_ORDER = ['wbw1', 'bbw1', 'bns', 'bnt', 'w2win', 'b2win', 'conv_w', 'conv_b',
                'wxp', 'bdt', 'nega', 'dparam', 'woutfc', 'bfc']


# ---------------- full forward -------------------------------------------------------
def mamba_tcm_forward(x, params):
    B, T, F = x.shape
    fp = fuse_params(params)
    args = [x.reshape(B * T, F)] + [fp[k] for k in _FUSED_ORDER]
    # No grid, no BlockSpecs, no scratch: whole arrays land in VMEM, single kernel invocation.
    out = pl.pallas_call(
        fused_kernel,
        out_shape=jax.ShapeDtypeStruct((B * T, N_CLASSES), jnp.float32),
    )(*args)
    return out.reshape(B, T, N_CLASSES)


# ---------------- deterministic parameter initialization ------------------------------
def init_params(key):
    ks = jax.random.split(key, 24)

    def nrm(k, shape, scale):
        return (scale * jax.random.normal(k, shape)).astype(jnp.float32)

    p = {}
    # frozen backbone proxy: Linear(FEAT, BB_OUT)
    p['wb'] = nrm(ks[0], (FEAT, BB_OUT), 0.2)
    p['bb'] = nrm(ks[1], (1, BB_OUT), 0.1)
    # embed_layer: Linear(BB_OUT, EMBED) -> BatchNorm1d(EMBED, eval) -> ELU -> Linear(EMBED, EMBED)
    p['w1'] = nrm(ks[2], (BB_OUT, EMBED), 0.2)
    p['b1'] = nrm(ks[3], (1, EMBED), 0.1)
    p['gamma'] = 1.0 + nrm(ks[4], (1, EMBED), 0.1)
    p['beta'] = nrm(ks[5], (1, EMBED), 0.1)
    p['rm'] = nrm(ks[6], (1, EMBED), 0.1)
    p['rv'] = 1.0 + jnp.abs(nrm(ks[7], (1, EMBED), 0.1))
    p['w2'] = nrm(ks[8], (EMBED, EMBED), 0.2)
    p['b2'] = nrm(ks[9], (1, EMBED), 0.1)
    # Mamba(d_model=EMBED, d_state=16, d_conv=4, expand=2) -- weights stored as (in, out)
    p['win_x'] = nrm(ks[10], (EMBED, D_INNER), 0.2)
    p['win_z'] = nrm(ks[11], (EMBED, D_INNER), 0.2)
    p['conv_w'] = nrm(ks[12], (D_CONV, D_INNER), 0.3)     # depthwise conv, (k, channel)
    p['conv_b'] = nrm(ks[13], (1, D_INNER), 0.1)
    p['wx_dt'] = nrm(ks[14], (D_INNER, DT_RANK), 0.2)
    p['wx_b'] = nrm(ks[15], (D_INNER, D_STATE), 0.2)
    p['wx_c'] = nrm(ks[16], (D_INNER, D_STATE), 0.2)
    p['wdt'] = nrm(ks[17], (DT_RANK, D_INNER), 0.5)
    p['bdt'] = nrm(ks[18], (1, D_INNER), 0.5)
    # A_log init as in Mamba: A[d, n] = n+1 -> stored transposed (d_state, d_inner)
    p['alog_t'] = (jnp.log(jnp.arange(1, D_STATE + 1, dtype=jnp.float32))[:, None]
                   * jnp.ones((1, D_INNER), jnp.float32))
    p['dparam'] = jnp.ones((1, D_INNER), jnp.float32)
    p['wout'] = nrm(ks[19], (D_INNER, EMBED), 0.2)
    # fc head: Linear(EMBED, 5)
    p['wfc'] = nrm(ks[20], (EMBED, N_CLASSES), 0.2)
    p['bfc'] = nrm(ks[21], (1, N_CLASSES), 0.1)
    return p


# ---------------- pure-JAX reference (unfused, same math, no Pallas) -------------------
def reference_forward(x, p):
    B, T, F = x.shape
    xf = x.reshape(B * T, F)
    h = xf @ p['wb'] + p['bb']
    e = h @ p['w1'] + p['b1']
    bn = (e - p['rm']) / jnp.sqrt(p['rv'] + BN_EPS) * p['gamma'] + p['beta']
    emb = (_elu(bn) @ p['w2'] + p['b2']).reshape(B, T, EMBED)

    x_in = emb @ p['win_x']
    z = emb @ p['win_z']
    conv = jnp.zeros_like(x_in) + p['conv_b']
    for k in range(D_CONV):
        shift = D_CONV - 1 - k
        xs = jnp.pad(x_in, ((0, 0), (shift, 0), (0, 0)))[:, :T, :]
        conv = conv + xs * p['conv_w'][k][None, None, :]
    xa = conv * _sigmoid(conv)

    dt = xa @ p['wx_dt']
    Bm = xa @ p['wx_b']
    Cm = xa @ p['wx_c']
    delta = _softplus(dt @ p['wdt'] + p['bdt'])
    negA = -jnp.exp(p['alog_t'])                               # (N, D_INNER)
    dA = jnp.exp(delta[:, :, None, :] * negA[None, None, :, :])
    dBu = delta[:, :, None, :] * Bm[..., None] * xa[:, :, None, :]

    hstate = jnp.zeros((B, D_STATE, D_INNER), jnp.float32)
    ys = []
    for t in range(T):
        hstate = dA[:, t] * hstate + dBu[:, t]
        ys.append(jnp.sum(hstate * Cm[:, t, :, None], axis=1))
    y = jnp.stack(ys, axis=1)
    y = y + xa * p['dparam']
    y = y * (z * _sigmoid(z))
    out_e = y @ p['wout']
    return out_e @ p['wfc'] + p['bfc']


if __name__ == "__main__":
    key = jax.random.PRNGKey(0)
    kx, kp = jax.random.split(key)
    x = jax.random.normal(kx, (BATCH, SEQ, FEAT), dtype=jnp.float32)
    params = init_params(kp)

    out = mamba_tcm_forward(x, params)
    out = jax.block_until_ready(out)
    assert out.shape == (BATCH, SEQ, N_CLASSES), out.shape

    ref = reference_forward(x, params)
    max_err = float(jnp.max(jnp.abs(out - ref)))
    if not bool(jnp.allclose(out, ref, atol=1e-2, rtol=1e-2)):
        raise AssertionError(f"kernel output mismatch vs reference, max abs err = {max_err}")

    print("KERNEL_OK")
</pallas_src>

<mosaic_0001>
module attributes {stable_mosaic.version = 11 : i64} {
  func.func @fused_kernel(%arg0: memref<16x32xf32, #tpu.memory_space<vmem>>, %arg1: memref<32x32xf32, #tpu.memory_space<vmem>>, %arg2: memref<1x32xf32, #tpu.memory_space<vmem>>, %arg3: memref<1x32xf32, #tpu.memory_space<vmem>>, %arg4: memref<1x32xf32, #tpu.memory_space<vmem>>, %arg5: memref<32x128xf32, #tpu.memory_space<vmem>>, %arg6: memref<1x128xf32, #tpu.memory_space<vmem>>, %arg7: memref<4x64xf32, #tpu.memory_space<vmem>>, %arg8: memref<1x64xf32, #tpu.memory_space<vmem>>, %arg9: memref<64x96xf32, #tpu.memory_space<vmem>>, %arg10: memref<1x64xf32, #tpu.memory_space<vmem>>, %arg11: memref<16x64xf32, #tpu.memory_space<vmem>>, %arg12: memref<1x64xf32, #tpu.memory_space<vmem>>, %arg13: memref<64x5xf32, #tpu.memory_space<vmem>>, %arg14: memref<1x5xf32, #tpu.memory_space<vmem>>, %arg15: memref<16x5xf32, #tpu.memory_space<vmem>>) attributes {dimension_semantics = [], scalar_prefetch = 0 : i64, scratch_operands = 0 : i64, tpu.core_type = #tpu.core_type<tc>} {
    %c0 = arith.constant 0 : index
    %c0_0 = arith.constant 0 : index
    %0 = vector.load %arg0[%c0, %c0_0] : memref<16x32xf32, #tpu.memory_space<vmem>>, vector<16x32xf32>
    %c0_1 = arith.constant 0 : index
    %c0_2 = arith.constant 0 : index
    %1 = vector.load %arg1[%c0_1, %c0_2] : memref<32x32xf32, #tpu.memory_space<vmem>>, vector<32x32xf32>
    %cst = arith.constant dense<0.000000e+00> : vector<16x32xf32>
    %2 = tpu.matmul %0, %1, %cst {dimension_numbers = #tpu.dot_dimension_numbers<[1], [0], [0], [1], [0, 0, 1, 1], [], []>} : vector<16x32xf32>, vector<32x32xf32>, vector<16x32xf32> -> vector<16x32xf32>
    %c0_3 = arith.constant 0 : index
    %c0_4 = arith.constant 0 : index
    %3 = vector.load %arg2[%c0_3, %c0_4] : memref<1x32xf32, #tpu.memory_space<vmem>>, vector<1x32xf32>
    %4 = vector.broadcast %3 : vector<1x32xf32> to vector<16x32xf32>
    %5 = arith.addf %2, %4 : vector<16x32xf32>
    %c0_5 = arith.constant 0 : index
    %c0_6 = arith.constant 0 : index
    %6 = vector.load %arg3[%c0_5, %c0_6] : memref<1x32xf32, #tpu.memory_space<vmem>>, vector<1x32xf32>
    %7 = vector.broadcast %6 : vector<1x32xf32> to vector<16x32xf32>
    %8 = arith.mulf %5, %7 : vector<16x32xf32>
    %c0_7 = arith.constant 0 : index
    %c0_8 = arith.constant 0 : index
    %9 = vector.load %arg4[%c0_7, %c0_8] : memref<1x32xf32, #tpu.memory_space<vmem>>, vector<1x32xf32>
    %10 = vector.broadcast %9 : vector<1x32xf32> to vector<16x32xf32>
    %11 = arith.addf %8, %10 : vector<16x32xf32>
    %cst_9 = arith.constant 0.000000e+00 : f32
    %12 = vector.broadcast %cst_9 : f32 to vector<16x32xf32>
    %13 = arith.cmpf ogt, %11, %12 : vector<16x32xf32>
    %14 = math.exp %11 : vector<16x32xf32>
    %cst_10 = arith.constant 1.000000e+00 : f32
    %15 = vector.broadcast %cst_10 : f32 to vector<16x32xf32>
    %16 = arith.subf %14, %15 : vector<16x32xf32>
    %17 = arith.select %13, %11, %16 : vector<16x32xi1>, vector<16x32xf32>
    %c0_11 = arith.constant 0 : index
    %c0_12 = arith.constant 0 : index
    %18 = vector.load %arg5[%c0_11, %c0_12] : memref<32x128xf32, #tpu.memory_space<vmem>>, vector<32x128xf32>
    %cst_13 = arith.constant dense<0.000000e+00> : vector<16x128xf32>
    %19 = tpu.matmul %17, %18, %cst_13 {dimension_numbers = #tpu.dot_dimension_numbers<[1], [0], [0], [1], [0, 0, 1, 1], [], []>} : vector<16x32xf32>, vector<32x128xf32>, vector<16x128xf32> -> vector<16x128xf32>
    %c0_14 = arith.constant 0 : index
    %c0_15 = arith.constant 0 : index
    %20 = vector.load %arg6[%c0_14, %c0_15] : memref<1x128xf32, #tpu.memory_space<vmem>>, vector<1x128xf32>
    %21 = vector.broadcast %20 : vector<1x128xf32> to vector<16x128xf32>
    %22 = arith.addf %19, %21 : vector<16x128xf32>
    %23 = vector.extract_strided_slice %22 {offsets = [0, 0], sizes = [16, 64], strides = [1, 1]} : vector<16x128xf32> to vector<16x64xf32>
    %24 = vector.extract_strided_slice %22 {offsets = [0, 64], sizes = [16, 64], strides = [1, 1]} : vector<16x128xf32> to vector<16x64xf32>
    %c0_16 = arith.constant 0 : index
    %c0_17 = arith.constant 0 : index
    %25 = vector.load %arg7[%c0_16, %c0_17] : memref<4x64xf32, #tpu.memory_space<vmem>>, vector<4x64xf32>
    %26 = tpu.iota {dimensions = array<i32: 0>} : vector<16x64xi32>
    %c8_i32 = arith.constant 8 : i32
    %c0_i32 = arith.constant 0 : i32
    %27 = arith.cmpi eq, %c8_i32, %c0_i32 : i32
    %c1_i32 = arith.constant 1 : i32
    %28 = arith.select %27, %c1_i32, %c8_i32 : i32
    %29 = vector.broadcast %28 : i32 to vector<16x64xi32>
    %30 = arith.remsi %26, %29 : vector<16x64xi32>
    %c0_i32_18 = arith.constant 0 : i32
    %31 = vector.broadcast %c0_i32_18 : i32 to vector<16x64xi32>
    %32 = arith.cmpi ne, %30, %31 : vector<16x64xi32>
    %c0_i32_19 = arith.constant 0 : i32
    %33 = vector.broadcast %c0_i32_19 : i32 to vector<16x64xi32>
    %34 = arith.cmpi slt, %30, %33 : vector<16x64xi32>
    %c0_i32_20 = arith.constant 0 : i32
    %35 = arith.cmpi slt, %28, %c0_i32_20 : i32
    %36 = vector.broadcast %35 : i1 to vector<16x64xi1>
    %37 = vector.broadcast %36 : vector<16x64xi1> to vector<16x64xi1>
    %38 = arith.xori %34, %37 : vector<16x64xi1>
    %39 = arith.andi %38, %32 : vector<16x64xi1>
    %40 = vector.broadcast %28 : i32 to vector<16x64xi32>
    %41 = arith.addi %30, %40 : vector<16x64xi32>
    %42 = arith.select %39, %41, %30 : vector<16x64xi1>, vector<16x64xi32>
    %c0_21 = arith.constant 0 : index
    %c0_22 = arith.constant 0 : index
    %43 = vector.load %arg8[%c0_21, %c0_22] : memref<1x64xf32, #tpu.memory_space<vmem>>, vector<1x64xf32>
    %44 = vector.extract_strided_slice %25 {offsets = [3, 0], sizes = [1, 64], strides = [1, 1]} : vector<4x64xf32> to vector<1x64xf32>
    %45 = vector.broadcast %44 : vector<1x64xf32> to vector<16x64xf32>
    %46 = arith.mulf %23, %45 : vector<16x64xf32>
    %47 = vector.broadcast %43 : vector<1x64xf32> to vector<16x64xf32>
    %48 = arith.addf %47, %46 : vector<16x64xf32>
    %c1_i32_23 = arith.constant 1 : i32
    %49 = tpu.dynamic_rotate %23 by %c1_i32_23 dim 0 : vector<16x64xf32>, i32 -> vector<16x64xf32>
    %c1_i32_24 = arith.constant 1 : i32
    %50 = vector.broadcast %c1_i32_24 : i32 to vector<16x64xi32>
    %51 = arith.cmpi sge, %42, %50 : vector<16x64xi32>
    %cst_25 = arith.constant 0.000000e+00 : f32
    %52 = vector.broadcast %cst_25 : f32 to vector<16x64xf32>
    %53 = arith.select %51, %49, %52 : vector<16x64xi1>, vector<16x64xf32>
    %54 = vector.extract_strided_slice %25 {offsets = [2, 0], sizes = [1, 64], strides = [1, 1]} : vector<4x64xf32> to vector<1x64xf32>
    %55 = vector.broadcast %54 : vector<1x64xf32> to vector<16x64xf32>
    %56 = arith.mulf %53, %55 : vector<16x64xf32>
    %57 = arith.addf %48, %56 : vector<16x64xf32>
    %c2_i32 = arith.constant 2 : i32
    %58 = tpu.dynamic_rotate %23 by %c2_i32 dim 0 : vector<16x64xf32>, i32 -> vector<16x64xf32>
    %c2_i32_26 = arith.constant 2 : i32
    %59 = vector.broadcast %c2_i32_26 : i32 to vector<16x64xi32>
    %60 = arith.cmpi sge, %42, %59 : vector<16x64xi32>
    %cst_27 = arith.constant 0.000000e+00 : f32
    %61 = vector.broadcast %cst_27 : f32 to vector<16x64xf32>
    %62 = arith.select %60, %58, %61 : vector<16x64xi1>, vector<16x64xf32>
    %63 = vector.extract_strided_slice %25 {offsets = [1, 0], sizes = [1, 64], strides = [1, 1]} : vector<4x64xf32> to vector<1x64xf32>
    %64 = vector.broadcast %63 : vector<1x64xf32> to vector<16x64xf32>
    %65 = arith.mulf %62, %64 : vector<16x64xf32>
    %66 = arith.addf %57, %65 : vector<16x64xf32>
    %c3_i32 = arith.constant 3 : i32
    %67 = tpu.dynamic_rotate %23 by %c3_i32 dim 0 : vector<16x64xf32>, i32 -> vector<16x64xf32>
    %c3_i32_28 = arith.constant 3 : i32
    %68 = vector.broadcast %c3_i32_28 : i32 to vector<16x64xi32>
    %69 = arith.cmpi sge, %42, %68 : vector<16x64xi32>
    %cst_29 = arith.constant 0.000000e+00 : f32
    %70 = vector.broadcast %cst_29 : f32 to vector<16x64xf32>
    %71 = arith.select %69, %67, %70 : vector<16x64xi1>, vector<16x64xf32>
    %72 = vector.extract_strided_slice %25 {offsets = [0, 0], sizes = [1, 64], strides = [1, 1]} : vector<4x64xf32> to vector<1x64xf32>
    %73 = vector.broadcast %72 : vector<1x64xf32> to vector<16x64xf32>
    %74 = arith.mulf %71, %73 : vector<16x64xf32>
    %75 = arith.addf %66, %74 : vector<16x64xf32>
    %cst_30 = arith.constant 0.000000e+00 : f32
    %76 = vector.broadcast %cst_30 : f32 to vector<16x64xf32>
    %77 = arith.subf %76, %75 : vector<16x64xf32>
    %78 = math.exp %77 : vector<16x64xf32>
    %cst_31 = arith.constant 1.000000e+00 : f32
    %79 = vector.broadcast %cst_31 : f32 to vector<16x64xf32>
    %80 = arith.addf %79, %78 : vector<16x64xf32>
    %cst_32 = arith.constant 1.000000e+00 : f32
    %81 = vector.broadcast %cst_32 : f32 to vector<16x64xf32>
    %82 = arith.divf %81, %80 : vector<16x64xf32>
    %83 = arith.mulf %75, %82 : vector<16x64xf32>
    %c0_33 = arith.constant 0 : index
    %c0_34 = arith.constant 0 : index
    %84 = vector.load %arg9[%c0_33, %c0_34] : memref<64x96xf32, #tpu.memory_space<vmem>>, vector<64x96xf32>
    %cst_35 = arith.constant dense<0.000000e+00> : vector<16x96xf32>
    %85 = tpu.matmul %83, %84, %cst_35 {dimension_numbers = #tpu.dot_dimension_numbers<[1], [0], [0], [1], [0, 0, 1, 1], [], []>} : vector<16x64xf32>, vector<64x96xf32>, vector<16x96xf32> -> vector<16x96xf32>
    %86 = vector.extract_strided_slice %85 {offsets = [0, 0], sizes = [16, 64], strides = [1, 1]} : vector<16x96xf32> to vector<16x64xf32>
    %c0_36 = arith.constant 0 : index
    %c0_37 = arith.constant 0 : index
    %87 = vector.load %arg10[%c0_36, %c0_37] : memref<1x64xf32, #tpu.memory_space<vmem>>, vector<1x64xf32>
    %88 = vector.broadcast %87 : vector<1x64xf32> to vector<16x64xf32>
    %89 = arith.addf %86, %88 : vector<16x64xf32>
    %cst_38 = arith.constant 2.000000e+01 : f32
    %90 = vector.broadcast %cst_38 : f32 to vector<16x64xf32>
    %91 = arith.cmpf ogt, %89, %90 : vector<16x64xf32>
    %92 = math.exp %89 : vector<16x64xf32>
    %cst_39 = arith.constant 1.000000e+00 : f32
    %93 = vector.broadcast %cst_39 : f32 to vector<16x64xf32>
    %94 = arith.addf %93, %92 : vector<16x64xf32>
    %95 = math.log %94 : vector<16x64xf32>
    %96 = arith.select %91, %89, %95 : vector<16x64xi1>, vector<16x64xf32>
    %97 = vector.extract_strided_slice %85 {offsets = [0, 64], sizes = [16, 16], strides = [1, 1]} : vector<16x96xf32> to vector<16x16xf32>
    %98 = vector.extract_strided_slice %85 {offsets = [0, 80], sizes = [16, 16], strides = [1, 1]} : vector<16x96xf32> to vector<16x16xf32>
    %c0_40 = arith.constant 0 : index
    %c0_41 = arith.constant 0 : index
    %99 = vector.load %arg11[%c0_40, %c0_41] : memref<16x64xf32, #tpu.memory_space<vmem>>, vector<16x64xf32>
    %100 = arith.mulf %96, %83 : vector<16x64xf32>
    %101 = vector.shape_cast %96 : vector<16x64xf32> to vector<2x8x64xf32>
    %102 = vector.shape_cast %100 : vector<16x64xf32> to vector<2x8x64xf32>
    %103 = vector.shape_cast %97 : vector<16x16xf32> to vector<2x8x16xf32>
    %104 = vector.shape_cast %98 : vector<16x16xf32> to vector<2x8x16xf32>
    %cst_42 = arith.constant 0.000000e+00 : f32
    %105 = vector.broadcast %cst_42 : f32 to vector<2x16x64xf32>
    %106 = vector.extract_strided_slice %101 {offsets = [0, 0, 0], sizes = [2, 1, 64], strides = [1, 1, 1]} : vector<2x8x64xf32> to vector<2x1x64xf32>
    %107 = vector.shape_cast %106 : vector<2x1x64xf32> to vector<2x64xf32>
    %108 = vector.shape_cast %107 : vector<2x64xf32> to vector<2x1x64xf32>
    %109 = vector.shape_cast %99 : vector<16x64xf32> to vector<1x16x64xf32>
    %110 = vector.broadcast %108 : vector<2x1x64xf32> to vector<2x16x64xf32>
    %111 = vector.broadcast %109 : vector<1x16x64xf32> to vector<2x16x64xf32>
    %112 = arith.mulf %110, %111 : vector<2x16x64xf32>
    %113 = math.exp %112 : vector<2x16x64xf32>
    %114 = vector.extract_strided_slice %103 {offsets = [0, 0, 0], sizes = [2, 1, 16], strides = [1, 1, 1]} : vector<2x8x16xf32> to vector<2x1x16xf32>
    %115 = vector.shape_cast %114 : vector<2x1x16xf32> to vector<2x16xf32>
    %116 = vector.shape_cast %115 : vector<2x16xf32> to vector<2x16x1xf32>
    %117 = vector.extract_strided_slice %102 {offsets = [0, 0, 0], sizes = [2, 1, 64], strides = [1, 1, 1]} : vector<2x8x64xf32> to vector<2x1x64xf32>
    %118 = vector.shape_cast %117 : vector<2x1x64xf32> to vector<2x64xf32>
    %119 = vector.shape_cast %118 : vector<2x64xf32> to vector<2x1x64xf32>
    %120 = vector.broadcast %116 : vector<2x16x1xf32> to vector<2x16x64xf32>
    %121 = vector.broadcast %119 : vector<2x1x64xf32> to vector<2x16x64xf32>
    %122 = arith.mulf %120, %121 : vector<2x16x64xf32>
    %123 = arith.mulf %113, %105 : vector<2x16x64xf32>
    %124 = arith.addf %123, %122 : vector<2x16x64xf32>
    %125 = vector.extract_strided_slice %104 {offsets = [0, 0, 0], sizes = [2, 1, 16], strides = [1, 1, 1]} : vector<2x8x16xf32> to vector<2x1x16xf32>
    %126 = vector.shape_cast %125 : vector<2x1x16xf32> to vector<2x16xf32>
    %127 = vector.shape_cast %126 : vector<2x16xf32> to vector<2x16x1xf32>
    %128 = vector.broadcast %127 : vector<2x16x1xf32> to vector<2x16x64xf32>
    %129 = arith.mulf %128, %124 : vector<2x16x64xf32>
    %cst_43 = arith.constant dense<0.000000e+00> : vector<2x64xf32>
    %130 = vector.multi_reduction <add>, %129, %cst_43 [1] : vector<2x16x64xf32> to vector<2x64xf32>
    %131 = vector.extract_strided_slice %101 {offsets = [0, 1, 0], sizes = [2, 1, 64], strides = [1, 1, 1]} : vector<2x8x64xf32> to vector<2x1x64xf32>
    %132 = vector.shape_cast %131 : vector<2x1x64xf32> to vector<2x64xf32>
    %133 = vector.shape_cast %132 : vector<2x64xf32> to vector<2x1x64xf32>
    %134 = vector.shape_cast %99 : vector<16x64xf32> to vector<1x16x64xf32>
    %135 = vector.broadcast %133 : vector<2x1x64xf32> to vector<2x16x64xf32>
    %136 = vector.broadcast %134 : vector<1x16x64xf32> to vector<2x16x64xf32>
    %137 = arith.mulf %135, %136 : vector<2x16x64xf32>
    %138 = math.exp %137 : vector<2x16x64xf32>
    %139 = vector.extract_strided_slice %103 {offsets = [0, 1, 0], sizes = [2, 1, 16], strides = [1, 1, 1]} : vector<2x8x16xf32> to vector<2x1x16xf32>
    %140 = vector.shape_cast %139 : vector<2x1x16xf32> to vector<2x16xf32>
    %141 = vector.shape_cast %140 : vector<2x16xf32> to vector<2x16x1xf32>
    %142 = vector.extract_strided_slice %102 {offsets = [0, 1, 0], sizes = [2, 1, 64], strides = [1, 1, 1]} : vector<2x8x64xf32> to vector<2x1x64xf32>
    %143 = vector.shape_cast %142 : vector<2x1x64xf32> to vector<2x64xf32>
    %144 = vector.shape_cast %143 : vector<2x64xf32> to vector<2x1x64xf32>
    %145 = vector.broadcast %141 : vector<2x16x1xf32> to vector<2x16x64xf32>
    %146 = vector.broadcast %144 : vector<2x1x64xf32> to vector<2x16x64xf32>
    %147 = arith.mulf %145, %146 : vector<2x16x64xf32>
    %148 = arith.mulf %138, %124 : vector<2x16x64xf32>
    %149 = arith.addf %148, %147 : vector<2x16x64xf32>
    %150 = vector.extract_strided_slice %104 {offsets = [0, 1, 0], sizes = [2, 1, 16], strides = [1, 1, 1]} : vector<2x8x16xf32> to vector<2x1x16xf32>
    %151 = vector.shape_cast %150 : vector<2x1x16xf32> to vector<2x16xf32>
    %152 = vector.shape_cast %151 : vector<2x16xf32> to vector<2x16x1xf32>
    %153 = vector.broadcast %152 : vector<2x16x1xf32> to vector<2x16x64xf32>
    %154 = arith.mulf %153, %149 : vector<2x16x64xf32>
    %cst_44 = arith.constant dense<0.000000e+00> : vector<2x64xf32>
    %155 = vector.multi_reduction <add>, %154, %cst_44 [1] : vector<2x16x64xf32> to vector<2x64xf32>
    %156 = vector.extract_strided_slice %101 {offsets = [0, 2, 0], sizes = [2, 1, 64], strides = [1, 1, 1]} : vector<2x8x64xf32> to vector<2x1x64xf32>
    %157 = vector.shape_cast %156 : vector<2x1x64xf32> to vector<2x64xf32>
    %158 = vector.shape_cast %157 : vector<2x64xf32> to vector<2x1x64xf32>
    %159 = vector.shape_cast %99 : vector<16x64xf32> to vector<1x16x64xf32>
    %160 = vector.broadcast %158 : vector<2x1x64xf32> to vector<2x16x64xf32>
    %161 = vector.broadcast %159 : vector<1x16x64xf32> to vector<2x16x64xf32>
    %162 = arith.mulf %160, %161 : vector<2x16x64xf32>
    %163 = math.exp %162 : vector<2x16x64xf32>
    %164 = vector.extract_strided_slice %103 {offsets = [0, 2, 0], sizes = [2, 1, 16], strides = [1, 1, 1]} : vector<2x8x16xf32> to vector<2x1x16xf32>
    %165 = vector.shape_cast %164 : vector<2x1x16xf32> to vector<2x16xf32>
    %166 = vector.shape_cast %165 : vector<2x16xf32> to vector<2x16x1xf32>
    %167 = vector.extract_strided_slice %102 {offsets = [0, 2, 0], sizes = [2, 1, 64], strides = [1, 1, 1]} : vector<2x8x64xf32> to vector<2x1x64xf32>
    %168 = vector.shape_cast %167 : vector<2x1x64xf32> to vector<2x64xf32>
    %169 = vector.shape_cast %168 : vector<2x64xf32> to vector<2x1x64xf32>
    %170 = vector.broadcast %166 : vector<2x16x1xf32> to vector<2x16x64xf32>
    %171 = vector.broadcast %169 : vector<2x1x64xf32> to vector<2x16x64xf32>
    %172 = arith.mulf %170, %171 : vector<2x16x64xf32>
    %173 = arith.mulf %163, %149 : vector<2x16x64xf32>
    %174 = arith.addf %173, %172 : vector<2x16x64xf32>
    %175 = vector.extract_strided_slice %104 {offsets = [0, 2, 0], sizes = [2, 1, 16], strides = [1, 1, 1]} : vector<2x8x16xf32> to vector<2x1x16xf32>
    %176 = vector.shape_cast %175 : vector<2x1x16xf32> to vector<2x16xf32>
    %177 = vector.shape_cast %176 : vector<2x16xf32> to vector<2x16x1xf32>
    %178 = vector.broadcast %177 : vector<2x16x1xf32> to vector<2x16x64xf32>
    %179 = arith.mulf %178, %174 : vector<2x16x64xf32>
    %cst_45 = arith.constant dense<0.000000e+00> : vector<2x64xf32>
    %180 = vector.multi_reduction <add>, %179, %cst_45 [1] : vector<2x16x64xf32> to vector<2x64xf32>
    %181 = vector.extract_strided_slice %101 {offsets = [0, 3, 0], sizes = [2, 1, 64], strides = [1, 1, 1]} : vector<2x8x64xf32> to vector<2x1x64xf32>
    %182 = vector.shape_cast %181 : vector<2x1x64xf32> to vector<2x64xf32>
    %183 = vector.shape_cast %182 : vector<2x64xf32> to vector<2x1x64xf32>
    %184 = vector.shape_cast %99 : vector<16x64xf32> to vector<1x16x64xf32>
    %185 = vector.broadcast %183 : vector<2x1x64xf32> to vector<2x16x64xf32>
    %186 = vector.broadcast %184 : vector<1x16x64xf32> to vector<2x16x64xf32>
    %187 = arith.mulf %185, %186 : vector<2x16x64xf32>
    %188 = math.exp %187 : vector<2x16x64xf32>
    %189 = vector.extract_strided_slice %103 {offsets = [0, 3, 0], sizes = [2, 1, 16], strides = [1, 1, 1]} : vector<2x8x16xf32> to vector<2x1x16xf32>
    %190 = vector.shape_cast %189 : vector<2x1x16xf32> to vector<2x16xf32>
    %191 = vector.shape_cast %190 : vector<2x16xf32> to vector<2x16x1xf32>
    %192 = vector.extract_strided_slice %102 {offsets = [0, 3, 0], sizes = [2, 1, 64], strides = [1, 1, 1]} : vector<2x8x64xf32> to vector<2x1x64xf32>
    %193 = vector.shape_cast %192 : vector<2x1x64xf32> to vector<2x64xf32>
    %194 = vector.shape_cast %193 : vector<2x64xf32> to vector<2x1x64xf32>
    %195 = vector.broadcast %191 : vector<2x16x1xf32> to vector<2x16x64xf32>
    %196 = vector.broadcast %194 : vector<2x1x64xf32> to vector<2x16x64xf32>
    %197 = arith.mulf %195, %196 : vector<2x16x64xf32>
    %198 = arith.mulf %188, %174 : vector<2x16x64xf32>
    %199 = arith.addf %198, %197 : vector<2x16x64xf32>
    %200 = vector.extract_strided_slice %104 {offsets = [0, 3, 0], sizes = [2, 1, 16], strides = [1, 1, 1]} : vector<2x8x16xf32> to vector<2x1x16xf32>
    %201 = vector.shape_cast %200 : vector<2x1x16xf32> to vector<2x16xf32>
    %202 = vector.shape_cast %201 : vector<2x16xf32> to vector<2x16x1xf32>
    %203 = vector.broadcast %202 : vector<2x16x1xf32> to vector<2x16x64xf32>
    %204 = arith.mulf %203, %199 : vector<2x16x64xf32>
    %cst_46 = arith.constant dense<0.000000e+00> : vector<2x64xf32>
    %205 = vector.multi_reduction <add>, %204, %cst_46 [1] : vector<2x16x64xf32> to vector<2x64xf32>
    %206 = vector.extract_strided_slice %101 {offsets = [0, 4, 0], sizes = [2, 1, 64], strides = [1, 1, 1]} : vector<2x8x64xf32> to vector<2x1x64xf32>
    %207 = vector.shape_cast %206 : vector<2x1x64xf32> to vector<2x64xf32>
    %208 = vector.shape_cast %207 : vector<2x64xf32> to vector<2x1x64xf32>
    %209 = vector.shape_cast %99 : vector<16x64xf32> to vector<1x16x64xf32>
    %210 = vector.broadcast %208 : vector<2x1x64xf32> to vector<2x16x64xf32>
    %211 = vector.broadcast %209 : vector<1x16x64xf32> to vector<2x16x64xf32>
    %212 = arith.mulf %210, %211 : vector<2x16x64xf32>
    %213 = math.exp %212 : vector<2x16x64xf32>
    %214 = vector.extract_strided_slice %103 {offsets = [0, 4, 0], sizes = [2, 1, 16], strides = [1, 1, 1]} : vector<2x8x16xf32> to vector<2x1x16xf32>
    %215 = vector.shape_cast %214 : vector<2x1x16xf32> to vector<2x16xf32>
    %216 = vector.shape_cast %215 : vector<2x16xf32> to vector<2x16x1xf32>
    %217 = vector.extract_strided_slice %102 {offsets = [0, 4, 0], sizes = [2, 1, 64], strides = [1, 1, 1]} : vector<2x8x64xf32> to vector<2x1x64xf32>
    %218 = vector.shape_cast %217 : vector<2x1x64xf32> to vector<2x64xf32>
    %219 = vector.shape_cast %218 : vector<2x64xf32> to vector<2x1x64xf32>
    %220 = vector.broadcast %216 : vector<2x16x1xf32> to vector<2x16x64xf32>
    %221 = vector.broadcast %219 : vector<2x1x64xf32> to vector<2x16x64xf32>
    %222 = arith.mulf %220, %221 : vector<2x16x64xf32>
    %223 = arith.mulf %213, %199 : vector<2x16x64xf32>
    %224 = arith.addf %223, %222 : vector<2x16x64xf32>
    %225 = vector.extract_strided_slice %104 {offsets = [0, 4, 0], sizes = [2, 1, 16], strides = [1, 1, 1]} : vector<2x8x16xf32> to vector<2x1x16xf32>
    %226 = vector.shape_cast %225 : vector<2x1x16xf32> to vector<2x16xf32>
    %227 = vector.shape_cast %226 : vector<2x16xf32> to vector<2x16x1xf32>
    %228 = vector.broadcast %227 : vector<2x16x1xf32> to vector<2x16x64xf32>
    %229 = arith.mulf %228, %224 : vector<2x16x64xf32>
    %cst_47 = arith.constant dense<0.000000e+00> : vector<2x64xf32>
    %230 = vector.multi_reduction <add>, %229, %cst_47 [1] : vector<2x16x64xf32> to vector<2x64xf32>
    %231 = vector.extract_strided_slice %101 {offsets = [0, 5, 0], sizes = [2, 1, 64], strides = [1, 1, 1]} : vector<2x8x64xf32> to vector<2x1x64xf32>
    %232 = vector.shape_cast %231 : vector<2x1x64xf32> to vector<2x64xf32>
    %233 = vector.shape_cast %232 : vector<2x64xf32> to vector<2x1x64xf32>
    %234 = vector.shape_cast %99 : vector<16x64xf32> to vector<1x16x64xf32>
    %235 = vector.broadcast %233 : vector<2x1x64xf32> to vector<2x16x64xf32>
    %236 = vector.broadcast %234 : vector<1x16x64xf32> to vector<2x16x64xf32>
    %237 = arith.mulf %235, %236 : vector<2x16x64xf32>
    %238 = math.exp %237 : vector<2x16x64xf32>
    %239 = vector.extract_strided_slice %103 {offsets = [0, 5, 0], sizes = [2, 1, 16], strides = [1, 1, 1]} : vector<2x8x16xf32> to vector<2x1x16xf32>
    %240 = vector.shape_cast %239 : vector<2x1x16xf32> to vector<2x16xf32>
    %241 = vector.shape_cast %240 : vector<2x16xf32> to vector<2x16x1xf32>
    %242 = vector.extract_strided_slice %102 {offsets = [0, 5, 0], sizes = [2, 1, 64], strides = [1, 1, 1]} : vector<2x8x64xf32> to vector<2x1x64xf32>
    %243 = vector.shape_cast %242 : vector<2x1x64xf32> to vector<2x64xf32>
    %244 = vector.shape_cast %243 : vector<2x64xf32> to vector<2x1x64xf32>
    %245 = vector.broadcast %241 : vector<2x16x1xf32> to vector<2x16x64xf32>
    %246 = vector.broadcast %244 : vector<2x1x64xf32> to vector<2x16x64xf32>
    %247 = arith.mulf %245, %246 : vector<2x16x64xf32>
    %248 = arith.mulf %238, %224 : vector<2x16x64xf32>
    %249 = arith.addf %248, %247 : vector<2x16x64xf32>
    %250 = vector.extract_strided_slice %104 {offsets = [0, 5, 0], sizes = [2, 1, 16], strides = [1, 1, 1]} : vector<2x8x16xf32> to vector<2x1x16xf32>
    %251 = vector.shape_cast %250 : vector<2x1x16xf32> to vector<2x16xf32>
    %252 = vector.shape_cast %251 : vector<2x16xf32> to vector<2x16x1xf32>
    %253 = vector.broadcast %252 : vector<2x16x1xf32> to vector<2x16x64xf32>
    %254 = arith.mulf %253, %249 : vector<2x16x64xf32>
    %cst_48 = arith.constant dense<0.000000e+00> : vector<2x64xf32>
    %255 = vector.multi_reduction <add>, %254, %cst_48 [1] : vector<2x16x64xf32> to vector<2x64xf32>
    %256 = vector.extract_strided_slice %101 {offsets = [0, 6, 0], sizes = [2, 1, 64], strides = [1, 1, 1]} : vector<2x8x64xf32> to vector<2x1x64xf32>
    %257 = vector.shape_cast %256 : vector<2x1x64xf32> to vector<2x64xf32>
    %258 = vector.shape_cast %257 : vector<2x64xf32> to vector<2x1x64xf32>
    %259 = vector.shape_cast %99 : vector<16x64xf32> to vector<1x16x64xf32>
    %260 = vector.broadcast %258 : vector<2x1x64xf32> to vector<2x16x64xf32>
    %261 = vector.broadcast %259 : vector<1x16x64xf32> to vector<2x16x64xf32>
    %262 = arith.mulf %260, %261 : vector<2x16x64xf32>
    %263 = math.exp %262 : vector<2x16x64xf32>
    %264 = vector.extract_strided_slice %103 {offsets = [0, 6, 0], sizes = [2, 1, 16], strides = [1, 1, 1]} : vector<2x8x16xf32> to vector<2x1x16xf32>
    %265 = vector.shape_cast %264 : vector<2x1x16xf32> to vector<2x16xf32>
    %266 = vector.shape_cast %265 : vector<2x16xf32> to vector<2x16x1xf32>
    %267 = vector.extract_strided_slice %102 {offsets = [0, 6, 0], sizes = [2, 1, 64], strides = [1, 1, 1]} : vector<2x8x64xf32> to vector<2x1x64xf32>
    %268 = vector.shape_cast %267 : vector<2x1x64xf32> to vector<2x64xf32>
    %269 = vector.shape_cast %268 : vector<2x64xf32> to vector<2x1x64xf32>
    %270 = vector.broadcast %266 : vector<2x16x1xf32> to vector<2x16x64xf32>
    %271 = vector.broadcast %269 : vector<2x1x64xf32> to vector<2x16x64xf32>
    %272 = arith.mulf %270, %271 : vector<2x16x64xf32>
    %273 = arith.mulf %263, %249 : vector<2x16x64xf32>
    %274 = arith.addf %273, %272 : vector<2x16x64xf32>
    %275 = vector.extract_strided_slice %104 {offsets = [0, 6, 0], sizes = [2, 1, 16], strides = [1, 1, 1]} : vector<2x8x16xf32> to vector<2x1x16xf32>
    %276 = vector.shape_cast %275 : vector<2x1x16xf32> to vector<2x16xf32>
    %277 = vector.shape_cast %276 : vector<2x16xf32> to vector<2x16x1xf32>
    %278 = vector.broadcast %277 : vector<2x16x1xf32> to vector<2x16x64xf32>
    %279 = arith.mulf %278, %274 : vector<2x16x64xf32>
    %cst_49 = arith.constant dense<0.000000e+00> : vector<2x64xf32>
    %280 = vector.multi_reduction <add>, %279, %cst_49 [1] : vector<2x16x64xf32> to vector<2x64xf32>
    %281 = vector.extract_strided_slice %101 {offsets = [0, 7, 0], sizes = [2, 1, 64], strides = [1, 1, 1]} : vector<2x8x64xf32> to vector<2x1x64xf32>
    %282 = vector.shape_cast %281 : vector<2x1x64xf32> to vector<2x64xf32>
    %283 = vector.shape_cast %282 : vector<2x64xf32> to vector<2x1x64xf32>
    %284 = vector.shape_cast %99 : vector<16x64xf32> to vector<1x16x64xf32>
    %285 = vector.broadcast %283 : vector<2x1x64xf32> to vector<2x16x64xf32>
    %286 = vector.broadcast %284 : vector<1x16x64xf32> to vector<2x16x64xf32>
    %287 = arith.mulf %285, %286 : vector<2x16x64xf32>
    %288 = math.exp %287 : vector<2x16x64xf32>
    %289 = vector.extract_strided_slice %103 {offsets = [0, 7, 0], sizes = [2, 1, 16], strides = [1, 1, 1]} : vector<2x8x16xf32> to vector<2x1x16xf32>
    %290 = vector.shape_cast %289 : vector<2x1x16xf32> to vector<2x16xf32>
    %291 = vector.shape_cast %290 : vector<2x16xf32> to vector<2x16x1xf32>
    %292 = vector.extract_strided_slice %102 {offsets = [0, 7, 0], sizes = [2, 1, 64], strides = [1, 1, 1]} : vector<2x8x64xf32> to vector<2x1x64xf32>
    %293 = vector.shape_cast %292 : vector<2x1x64xf32> to vector<2x64xf32>
    %294 = vector.shape_cast %293 : vector<2x64xf32> to vector<2x1x64xf32>
    %295 = vector.broadcast %291 : vector<2x16x1xf32> to vector<2x16x64xf32>
    %296 = vector.broadcast %294 : vector<2x1x64xf32> to vector<2x16x64xf32>
    %297 = arith.mulf %295, %296 : vector<2x16x64xf32>
    %298 = arith.mulf %288, %274 : vector<2x16x64xf32>
    %299 = arith.addf %298, %297 : vector<2x16x64xf32>
    %300 = vector.extract_strided_slice %104 {offsets = [0, 7, 0], sizes = [2, 1, 16], strides = [1, 1, 1]} : vector<2x8x16xf32> to vector<2x1x16xf32>
    %301 = vector.shape_cast %300 : vector<2x1x16xf32> to vector<2x16xf32>
    %302 = vector.shape_cast %301 : vector<2x16xf32> to vector<2x16x1xf32>
    %303 = vector.broadcast %302 : vector<2x16x1xf32> to vector<2x16x64xf32>
    %304 = arith.mulf %303, %299 : vector<2x16x64xf32>
    %cst_50 = arith.constant dense<0.000000e+00> : vector<2x64xf32>
    %305 = vector.multi_reduction <add>, %304, %cst_50 [1] : vector<2x16x64xf32> to vector<2x64xf32>
    %306 = vector.shape_cast %130 : vector<2x64xf32> to vector<2x1x64xf32>
    %307 = vector.shape_cast %155 : vector<2x64xf32> to vector<2x1x64xf32>
    %308 = vector.shape_cast %180 : vector<2x64xf32> to vector<2x1x64xf32>
    %309 = vector.shape_cast %205 : vector<2x64xf32> to vector<2x1x64xf32>
    %310 = vector.shape_cast %230 : vector<2x64xf32> to vector<2x1x64xf32>
    %311 = vector.shape_cast %255 : vector<2x64xf32> to vector<2x1x64xf32>
    %312 = vector.shape_cast %280 : vector<2x64xf32> to vector<2x1x64xf32>
    %313 = vector.shape_cast %305 : vector<2x64xf32> to vector<2x1x64xf32>
    %314 = tpu.concatenate %306, %307, %308, %309, %310, %311, %312, %313 in 1 : vector<2x1x64xf32>, vector<2x1x64xf32>, vector<2x1x64xf32>, vector<2x1x64xf32>, vector<2x1x64xf32>, vector<2x1x64xf32>, vector<2x1x64xf32>, vector<2x1x64xf32> -> vector<2x8x64xf32>
    %315 = vector.shape_cast %314 : vector<2x8x64xf32> to vector<16x64xf32>
    %c0_51 = arith.constant 0 : index
    %c0_52 = arith.constant 0 : index
    %316 = vector.load %arg12[%c0_51, %c0_52] : memref<1x64xf32, #tpu.memory_space<vmem>>, vector<1x64xf32>
    %317 = vector.broadcast %316 : vector<1x64xf32> to vector<16x64xf32>
    %318 = arith.mulf %83, %317 : vector<16x64xf32>
    %319 = arith.addf %315, %318 : vector<16x64xf32>
    %cst_53 = arith.constant 0.000000e+00 : f32
    %320 = vector.broadcast %cst_53 : f32 to vector<16x64xf32>
    %321 = arith.subf %320, %24 : vector<16x64xf32>
    %322 = math.exp %321 : vector<16x64xf32>
    %cst_54 = arith.constant 1.000000e+00 : f32
    %323 = vector.broadcast %cst_54 : f32 to vector<16x64xf32>
    %324 = arith.addf %323, %322 : vector<16x64xf32>
    %cst_55 = arith.constant 1.000000e+00 : f32
    %325 = vector.broadcast %cst_55 : f32 to vector<16x64xf32>
    %326 = arith.divf %325, %324 : vector<16x64xf32>
    %327 = arith.mulf %24, %326 : vector<16x64xf32>
    %328 = arith.mulf %319, %327 : vector<16x64xf32>
    %c0_56 = arith.constant 0 : index
    %c0_57 = arith.constant 0 : index
    %329 = vector.load %arg13[%c0_56, %c0_57] : memref<64x5xf32, #tpu.memory_space<vmem>>, vector<64x5xf32>
    %cst_58 = arith.constant dense<0.000000e+00> : vector<16x5xf32>
    %330 = tpu.matmul %328, %329, %cst_58 {dimension_numbers = #tpu.dot_dimension_numbers<[1], [0], [0], [1], [0, 0, 1, 1], [], []>} : vector<16x64xf32>, vector<64x5xf32>, vector<16x5xf32> -> vector<16x5xf32>
    %c0_59 = arith.constant 0 : index
    %c0_60 = arith.constant 0 : index
    %331 = vector.load %arg14[%c0_59, %c0_60] : memref<1x5xf32, #tpu.memory_space<vmem>>, vector<1x5xf32>
    %332 = vector.broadcast %331 : vector<1x5xf32> to vector<16x5xf32>
    %333 = arith.addf %330, %332 : vector<16x5xf32>
    %c0_61 = arith.constant 0 : index
    %c0_62 = arith.constant 0 : index
    %334 = vector.load %arg15[%c0_61, %c0_62] : memref<16x5xf32, #tpu.memory_space<vmem>>, vector<16x5xf32>
    tpu.vector_store %arg15[%c0_61, %c0_62], %333 {strides = array<i32>} : memref<16x5xf32, #tpu.memory_space<vmem>>, vector<16x5xf32>,
    return
  }
}

</mosaic_0001>

<llo_original>
// kernel: tpu_custom_call.1
$region0: #{tpu_custom_call.1}
  #allocation0 [shape = 'u32[]', space=smem, size = 0x4, offset = 0x4, fixed_abs, tag = 'smem constant byte address 0x4 - core index']
  #allocation1 [shape = 'u32[72,128]{1,0:T(1,128)}', space=vmem, size = 0x9000, scoped, tag = 'internal scratch']
  %s0 = inlined_call_operand.hbm [shape: f32[16,32], index: 0, kind: input, shape index: {}]
  %s1 = inlined_call_operand.hbm [shape: f32[32,32], index: 1, kind: input, shape index: {}]
  %s2 = inlined_call_operand.vmem [shape: f32[1,32], index: 2, kind: input, shape index: {}]
  %s3 = inlined_call_operand.vmem [shape: f32[1,32], index: 3, kind: input, shape index: {}]
  %s4 = inlined_call_operand.vmem [shape: f32[1,32], index: 4, kind: input, shape index: {}]
  %s5 = inlined_call_operand.hbm [shape: f32[32,128], index: 5, kind: input, shape index: {}]
  %s6 = inlined_call_operand.vmem [shape: f32[1,128], index: 6, kind: input, shape index: {}]
  %s7 = inlined_call_operand.vmem [shape: f32[4,64], index: 7, kind: input, shape index: {}]
  %s8 = inlined_call_operand.vmem [shape: f32[1,64], index: 8, kind: input, shape index: {}]
  %s9 = inlined_call_operand.vmem [shape: f32[64,96], index: 9, kind: input, shape index: {}]
  %s10 = inlined_call_operand.vmem [shape: f32[1,64], index: 10, kind: input, shape index: {}]
  %s11 = inlined_call_operand.hbm [shape: f32[16,64], index: 11, kind: input, shape index: {}]
  %s12 = inlined_call_operand.vmem [shape: f32[1,64], index: 12, kind: input, shape index: {}]
  %s13 = inlined_call_operand.vmem [shape: f32[64,5], index: 13, kind: input, shape index: {}]
  %s14 = inlined_call_operand.vmem [shape: f32[1,5], index: 14, kind: input, shape index: {}]
  %s15 = inlined_call_operand.vmem [shape: f32[16,5], index: 15, kind: output, shape index: {}]
  %s16 = sld [smem:[#allocation0]]
  $region86: #{tpu_custom_call.1} parent=0
    _
  %s18 = ssub.s32 1, %s16
  %s19 = scalar_select 0, %s18, %s16
  $region1: #{tpu_custom_call.1} parent=0
    #allocation2 [shape = 'u8[8192]{0}', space=vmem, size = 0x2000, scoped, tag = 'input window, operand 0, single buffered']
    #allocation3 [shape = 's32[1]{0}', space=sflag, size = 0x4, scoped, tag = 'scoped memory for tpu_custom_call.1']
    #allocation4 [shape = 'u8[16384]{0}', space=vmem, size = 0x4000, scoped, tag = 'input window, operand 1, single buffered']
    #allocation5 [shape = 's32[1]{0}', space=sflag, size = 0x4, scoped, tag = 'scoped memory for tpu_custom_call.1']
    #allocation6 [shape = 'u8[16384]{0}', space=vmem, size = 0x4000, scoped, tag = 'input window, operand 5, single buffered']
    #allocation7 [shape = 'u8[8192]{0}', space=vmem, size = 0x2000, scoped, tag = 'input window, operand 11, single buffered']
    #allocation8 [shape = 's32[1]{0}', space=sflag, size = 0x4, scoped, tag = 'scoped memory for tpu_custom_call.1']
    %20 = vsyncpa [#allocation3], 0
    %21 = vsyncpa [#allocation5], 0
    %22 = vsyncpa [#allocation8], 0
    // Predicated region
    $region2: #{tpu_custom_call.1} parent=1 // pred_check
      _
    $region3: #{tpu_custom_call.1} parent=1 // pred_check_branch
      %24 = sbr.rel (0) target = $region5
    $region4: #{tpu_custom_call.1} parent=1 // pred_region
      %26 = vsyncadd [#allocation3], 0
      %s27 = sshll.u32 %s0, 4
      %s28 = int_to_ptr.hbm [resolvable:$true] %s27
      %s29 = sshll.u32 [#allocation2], 4
      %s30 = int_to_ptr.vmem [resolvable:$true] %s29
      %35 = dma.hbm_to_vmem [thread:$0]  %s28, 256, %s30, [#allocation3], 128, 128, 8
    $region5: #{tpu_custom_call.1} parent=1 // pred_fallthru
      _
    // Predicated region
    $region6: #{tpu_custom_call.1} parent=1 // pred_check
      _
    $region7: #{tpu_custom_call.1} parent=1 // pred_check_branch
      %37 = sbr.rel (0) target = $region9
    $region8: #{tpu_custom_call.1} parent=1 // pred_region
      %39 = vsyncadd [#allocation5], 0
      %s40 = sshll.u32 %s1, 4
      %s41 = int_to_ptr.hbm [resolvable:$true] %s40
      %s42 = sshll.u32 [#allocation4], 4
      %s43 = int_to_ptr.vmem [resolvable:$true] %s42
      %48 = dma.hbm_to_vmem [thread:$0]  %s41, 512, %s43, [#allocation5], 128, 128, 8
    $region9: #{tpu_custom_call.1} parent=1 // pred_fallthru
      _
    // Predicated region
    $region10: #{tpu_custom_call.1} parent=1 // pred_check
      _
    $region11: #{tpu_custom_call.1} parent=1 // pred_check_branch
      %50 = sbr.rel (0) target = $region13
    $region12: #{tpu_custom_call.1} parent=1 // pred_region
      _
    $region13: #{tpu_custom_call.1} parent=1 // pred_fallthru
      _
    // Predicated region
    $region14: #{tpu_custom_call.1} parent=1 // pred_check
      _
    $region15: #{tpu_custom_call.1} parent=1 // pred_check_branch
      %52 = sbr.rel (0) target = $region17
    $region16: #{tpu_custom_call.1} parent=1 // pred_region
      _
    $region17: #{tpu_custom_call.1} parent=1 // pred_fallthru
      _
    // Predicated region
    $region18: #{tpu_custom_call.1} parent=1 // pred_check
      _
    $region19: #{tpu_custom_call.1} parent=1 // pred_check_branch
      %54 = sbr.rel (0) target = $region21
    $region20: #{tpu_custom_call.1} parent=1 // pred_region
      _
    $region21: #{tpu_custom_call.1} parent=1 // pred_fallthru
      _
    // Predicated region
    $region22: #{tpu_custom_call.1} parent=1 // pred_check
      _
    $region23: #{tpu_custom_call.1} parent=1 // pred_check_branch
      %56 = sbr.rel (0) target = $region25
    $region24: #{tpu_custom_call.1} parent=1 // pred_region
      %58 = vsyncadd [#allocation5], 0
      %s59 = sshll.u32 %s5, 4
      %s60 = int_to_ptr.hbm [resolvable:$true] %s59
      %s61 = sshll.u32 [#allocation6], 4
      %s62 = int_to_ptr.vmem [resolvable:$true] %s61
      %67 = dma.hbm_to_vmem [thread:$0]  %s60, 512, %s62, [#allocation5], 128, 128, 8
    $region25: #{tpu_custom_call.1} parent=1 // pred_fallthru
      _
    // Predicated region
    $region26: #{tpu_custom_call.1} parent=1 // pred_check
      _
    $region27: #{tpu_custom_call.1} parent=1 // pred_check_branch
      %69 = sbr.rel (0) target = $region29
    $region28: #{tpu_custom_call.1} parent=1 // pred_region
      _
    $region29: #{tpu_custom_call.1} parent=1 // pred_fallthru
      _
    // Predicated region
    $region30: #{tpu_custom_call.1} parent=1 // pred_check
      _
    $region31: #{tpu_custom_call.1} parent=1 // pred_check_branch
      %71 = sbr.rel (0) target = $region33
    $region32: #{tpu_custom_call.1} parent=1 // pred_region
      _
    $region33: #{tpu_custom_call.1} parent=1 // pred_fallthru
      _
    // Predicated region
    $region34: #{tpu_custom_call.1} parent=1 // pred_check
      _
    $region35: #{tpu_custom_call.1} parent=1 // pred_check_branch
      %73 = sbr.rel (0) target = $region37
    $region36: #{tpu_custom_call.1} parent=1 // pred_region
      _
    $region37: #{tpu_custom_call.1} parent=1 // pred_fallthru
      _
    // Predicated region
    $region38: #{tpu_custom_call.1} parent=1 // pred_check
      _
    $region39: #{tpu_custom_call.1} parent=1 // pred_check_branch
      %75 = sbr.rel (0) target = $region41
    $region40: #{tpu_custom_call.1} parent=1 // pred_region
      _
    $region41: #{tpu_custom_call.1} parent=1 // pred_fallthru
      _
    // Predicated region
    $region42: #{tpu_custom_call.1} parent=1 // pred_check
      _
    $region43: #{tpu_custom_call.1} parent=1 // pred_check_branch
      %77 = sbr.rel (0) target = $region45
    $region44: #{tpu_custom_call.1} parent=1 // pred_region
      _
    $region45: #{tpu_custom_call.1} parent=1 // pred_fallthru
      _
    // Predicated region
    $region46: #{tpu_custom_call.1} parent=1 // pred_check
      _
    $region47: #{tpu_custom_call.1} parent=1 // pred_check_branch
      %79 = sbr.rel (0) target = $region49
    $region48: #{tpu_custom_call.1} parent=1 // pred_region
      %81 = vsyncadd [#allocation8], 0
      %s82 = sshll.u32 %s11, 4
      %s83 = int_to_ptr.hbm [resolvable:$true] %s82
      %s84 = sshll.u32 [#allocation7], 4
      %s85 = int_to_ptr.vmem [resolvable:$true] %s84
      %90 = dma.hbm_to_vmem [thread:$0]  %s83, 256, %s85, [#allocation8], 128, 128, 8
    $region49: #{tpu_custom_call.1} parent=1 // pred_fallthru
      _
    // Predicated region
    $region50: #{tpu_custom_call.1} parent=1 // pred_check
      _
    $region51: #{tpu_custom_call.1} parent=1 // pred_check_branch
      %92 = sbr.rel (0) target = $region53
    $region52: #{tpu_custom_call.1} parent=1 // pred_region
      _
    $region53: #{tpu_custom_call.1} parent=1 // pred_fallthru
      _
    // Predicated region
    $region54: #{tpu_custom_call.1} parent=1 // pred_check
      _
    $region55: #{tpu_custom_call.1} parent=1 // pred_check_branch
      %94 = sbr.rel (0) target = $region57
    $region56: #{tpu_custom_call.1} parent=1 // pred_region
      _
    $region57: #{tpu_custom_call.1} parent=1 // pred_fallthru
      _
    // Predicated region
    $region58: #{tpu_custom_call.1} parent=1 // pred_check
      _
    $region59: #{tpu_custom_call.1} parent=1 // pred_check_branch
      %96 = sbr.rel (0) target = $region61
    $region60: #{tpu_custom_call.1} parent=1 // pred_region
      _
    $region61: #{tpu_custom_call.1} parent=1 // pred_fallthru
      _
    // Predicated region
    $region62: #{tpu_custom_call.1} parent=1 // pred_check
      _
    $region63: #{tpu_custom_call.1} parent=1 // pred_check_branch
      %98 = sbr.rel (0) target = $region65
    $region64: #{tpu_custom_call.1} parent=1 // pred_region
      %100 = dma.done [#allocation3], 256
    $region65: #{tpu_custom_call.1} parent=1 // pred_fallthru
      _
    // Predicated region
    $region66: #{tpu_custom_call.1} parent=1 // pred_check
      _
    $region67: #{tpu_custom_call.1} parent=1 // pred_check_branch
      %102 = sbr.rel (0) target = $region69
    $region68: #{tpu_custom_call.1} parent=1 // pred_region
      %104 = dma.done [#allocation5], 512
    $region69: #{tpu_custom_call.1} parent=1 // pred_fallthru
      _
    // Predicated region
    $region70: #{tpu_custom_call.1} parent=1 // pred_check
      _
    $region71: #{tpu_custom_call.1} parent=1 // pred_check_branch
      %106 = sbr.rel (0) target = $region73
    $region72: #{tpu_custom_call.1} parent=1 // pred_region
      %108 = dma.done [#allocation5], 512
    $region73: #{tpu_custom_call.1} parent=1 // pred_fallthru
      _
    // Predicated region
    $region74: #{tpu_custom_call.1} parent=1 // pred_check
      _
    $region75: #{tpu_custom_call.1} parent=1 // pred_check_branch
      %110 = sbr.rel (0) target = $region77
    $region76: #{tpu_custom_call.1} parent=1 // pred_region
      %112 = dma.done [#allocation8], 256
    $region77: #{tpu_custom_call.1} parent=1 // pred_fallthru
      _
    %v113 = vld [vmem:[#allocation2] sm:$0xff]
    %v114 = vld [vmem:[#allocation2 + $0x8] sm:$0xff]
    %v115 = vld [vmem:[#allocation4] sm:$0xff]
    %v116 = vld [vmem:[#allocation4 + $0x8] sm:$0xff]
    %v117 = vld [vmem:[#allocation4 + $0x10] sm:$0xff]
    %v118 = vld [vmem:[#allocation4 + $0x18] sm:$0xff]
    %v119 = vld [vmem:[%s2] sm:$0x1]
    %v121 = vperm.slane %v119, 0
    %vm123 = vcmask 261120
    %v125 = vsel %vm123, %v113, 0
    %v128 = vsel %vm123, %v114, 0
    %130 = vmatpush.msra.mxu0 0.0
    %131 = vmatpush.msra.mxu0 0.0
    %132 = vmatpush.msra.mxu0 0.0
    %133 = vmatpush.msra.mxu0 0.0
    %134 = vmatpush.msra.mxu0 0.0
    %135 = vmatpush.msra.mxu0 0.0
    %136 = vmatpush.msra.mxu0 0.0
    %137 = vmatpush.msra.mxu0 0.0
    %138 = vmatpush.msra.mxu0 0.0
    %139 = vmatpush.msra.mxu0 0.0
    %140 = vmatpush.msra.mxu0 0.0
    %141 = vmatpush.msra.mxu0 0.0
    %142 = vmatpush.msra.mxu0 %v118
    %143 = vmatpush.msra.mxu0 %v117
    %144 = vmatpush.msra.mxu0 %v116
    %145 = vmatpush.msra.mxu0 %v115
    %146 = vmatmul.f32.gmra.mxu0 %v125
    %v147 = vpop.f32.mrf.mxu0
    %v148 = vadd.f32 %v121, %v147
    %149 = vmatmul.f32.gmra.mxu0 %v128
    %v150 = vpop.f32.mrf.mxu0
    %v151 = vadd.f32 %v121, %v150
    %152 = vdwg.mxu0
    %v153 = vld [vmem:[%s3] sm:$0x1]
    %v155 = vperm.slane %v153, 0
    %v157 = vmul.f32 %v148, %v155
    %v158 = vmul.f32 %v151, %v155
    %v159 = vld [vmem:[%s4] sm:$0x1]
    %v161 = vperm.slane %v159, 0
    %v163 = vadd.f32 %v157, %v161
    %v164 = vadd.f32 %v158, %v161
    %vm165 = vcmp.gt.f32.partialorder %v163, 0.0
    %vm166 = vcmp.gt.f32.partialorder %v164, 0.0
    %v167 = vmul.f32 %v163, 1.442695
    %v168 = vpow.pop %v167
    %v169 = vmul.f32 %v164, 1.442695
    %v170 = vpow.pop %v169
    %v171 = vsub.f32 %v168, 1.0
    %v172 = vsub.f32 %v170, 1.0
    %v173 = vsel %vm165, %v163, %v171
    %v174 = vsel %vm166, %v164, %v172
    %v175 = vld [vmem:[#allocation6] sm:$0xff]
    %v176 = vld [vmem:[#allocation6 + $0x8] sm:$0xff]
    %v177 = vld [vmem:[#allocation6 + $0x10] sm:$0xff]
    %v178 = vld [vmem:[#allocation6 + $0x18] sm:$0xff]
    %v179 = vld [vmem:[%s6] sm:$0x1]
    %v181 = vperm.slane %v179, 0
    %v184 = vsel %vm123, %v173, 0
    %v187 = vsel %vm123, %v174, 0
    %189 = vmatpush.msra.mxu0 0.0
    %190 = vmatpush.msra.mxu0 0.0
    %191 = vmatpush.msra.mxu0 0.0
    %192 = vmatpush.msra.mxu0 0.0
    %193 = vmatpush.msra.mxu0 0.0
    %194 = vmatpush.msra.mxu0 0.0
    %195 = vmatpush.msra.mxu0 0.0
    %196 = vmatpush.msra.mxu0 0.0
    %197 = vmatpush.msra.mxu0 0.0
    %198 = vmatpush.msra.mxu0 0.0
    %199 = vmatpush.msra.mxu0 0.0
    %200 = vmatpush.msra.mxu0 0.0
    %201 = vmatpush.msra.mxu0 %v178
    %202 = vmatpush.msra.mxu0 %v177
    %203 = vmatpush.msra.mxu0 %v176
    %204 = vmatpush.msra.mxu0 %v175
    %205 = vmatmul.f32.gmra.mxu0 %v184
    %v206 = vpop.f32.mrf.mxu0
    %v207 = vadd.f32 %v181, %v206
    %208 = vmatmul.f32.gmra.mxu0 %v187
    %v209 = vpop.f32.mrf.mxu0
    %v210 = vadd.f32 %v181, %v209
    %211 = vdwg.mxu0
    %v212 = vld [vmem:[%s7] sm:$0xf]
    %v213 = vlaneseq
    %v214 = vshrl.u32 %v213, 7
    %v215 = vadd.s32 %v214, 8
    %vm216 = vcmp.lt.s32.totalorder %v214, 0
    %v217 = vsub.s32 0, %v214
    %v218 = vsel %vm216, %v217, %v214
    %v219 = vshrl.u32 %v218, 3
    %v220 = vand.u32 %v218, 7
    %v221 = vsub.s32 0, %v220
    %v222 = vsel %vm216, %v221, %v220
    %vm223 = vcmp.lt.s32.totalorder %v215, 0
    %v224 = vsub.s32 0, %v215
    %v225 = vsel %vm223, %v224, %v215
    %v226 = vshrl.u32 %v225, 3
    %v227 = vand.u32 %v225, 7
    %v228 = vsub.s32 0, %v227
    %v229 = vsel %vm223, %v228, %v227
    %vm230 = vcmp.ne.s32.totalorder %v222, 0
    %vm231 = vcmp.ne.s32.totalorder %v229, 0
    %vm232 = vcmp.lt.s32.totalorder %v222, 0
    %vm233 = vcmp.lt.s32.totalorder %v229, 0
    %vm234 = vmand %vm232, %vm230
    %vm235 = vmand %vm233, %vm231
    %v236 = vadd.s32 %v222, 8
    %v237 = vadd.s32 %v229, 8
    %v238 = vsel %vm234, %v236, %v222
    %v239 = vsel %vm235, %v237, %v229
    %v240 = vld [vmem:[%s8] sm:$0x1]
    %v241 = vperm.slane %v212, 3
    %v242 = vmul.f32 %v207, %v241
    %v243 = vmul.f32 %v210, %v241
    %v245 = vperm.slane %v240, 0
    %v247 = vadd.f32 %v245, %v242
    %v248 = vadd.f32 %v245, %v243
    %v249 = vrot.slane %v207, 7
    %v250 = vrot.slane %v210, 7
    %vm251 = vcmp.lt.s32.totalorder %v214, 1
    %v252 = vsel %vm251, %v249, %v250
    %v253 = vsel %vm251, %v250, %v249
    %vm254 = vcmp.ge.s32.totalorder %v238, 1
    %vm255 = vcmp.ge.s32.totalorder %v239, 1
    %v256 = vsel %vm254, %v253, 0.0
    %v257 = vsel %vm255, %v252, 0.0
    %v258 = vperm.slane %v212, 2
    %v259 = vmul.f32 %v256, %v258
    %v260 = vmul.f32 %v257, %v258
    %v261 = vadd.f32 %v247, %v259
    %v262 = vadd.f32 %v248, %v260
    %v263 = vrot.slane %v207, 6
    %v264 = vrot.slane %v210, 6
    %vm265 = vcmp.lt.s32.totalorder %v214, 2
    %v266 = vsel %vm265, %v263, %v264
    %v267 = vsel %vm265, %v264, %v263
    %vm268 = vcmp.ge.s32.totalorder %v238, 2
    %vm269 = vcmp.ge.s32.totalorder %v239, 2
    %v270 = vsel %vm268, %v267, 0.0
    %v271 = vsel %vm269, %v266, 0.0
    %v272 = vperm.slane %v212, 1
    %v273 = vmul.f32 %v270, %v272
    %v274 = vmul.f32 %v271, %v272
    %v275 = vadd.f32 %v261, %v273
    %v276 = vadd.f32 %v262, %v274
    %v277 = vrot.slane %v207, 5
    %v278 = vrot.slane %v210, 5
    %vm279 = vcmp.lt.s32.totalorder %v214, 3
    %v280 = vsel %vm279, %v277, %v278
    %v281 = vsel %vm279, %v278, %v277
    %vm282 = vcmp.ge.s32.totalorder %v238, 3
    %vm283 = vcmp.ge.s32.totalorder %v239, 3
    %v284 = vsel %vm282, %v281, 0.0
    %v285 = vsel %vm283, %v280, 0.0
    %v286 = vperm.slane %v212, 0
    %v287 = vmul.f32 %v284, %v286
    %v288 = vmul.f32 %v285, %v286
    %v289 = vadd.f32 %v275, %v287
    %v290 = vadd.f32 %v276, %v288
    %v291 = vsub.f32 0.0, %v289
    %v292 = vsub.f32 0.0, %v290
    %v293 = vmul.f32 %v291, 1.442695
    %v294 = vpow.pop %v293
    %v295 = vmul.f32 %v292, 1.442695
    %v296 = vpow.pop %v295
    %v297 = vadd.f32 %v294, 1.0
    %v298 = vadd.f32 %v296, 1.0
    %v299 = vrcp.pop %v297
    %v300 = vmul.f32 %v297, %v299
    %v301 = vsub.f32 1.0, %v300
    %v302 = vmul.f32 %v299, %v301
    %v303 = vadd.f32 %v299, %v302
    %vm304 = vweird.f32 %v297
    %vm305 = vweird.f32 %v299
    %vm306 = vmor %vm304, %vm305
    %v307 = vsel %vm306, %v299, %v303
    %v308 = vand.u32 2147483647, %v297
    %vm309 = vcmp.eq.f32.partialorder %v308, 8.507059e+37
    %v310 = vand.u32 %v297, 2147483648
    %v311 = vor.u32 1.1754944e-38, %v310
    %v312 = vsel %vm309, %v311, %v307
    %v313 = vmul.f32 1.0, %v312
    %v314 = vrcp.pop %v298
    %v315 = vmul.f32 %v298, %v314
    %v316 = vsub.f32 1.0, %v315
    %v317 = vmul.f32 %v314, %v316
    %v318 = vadd.f32 %v314, %v317
    %vm319 = vweird.f32 %v298
    %vm320 = vweird.f32 %v314
    %vm321 = vmor %vm319, %vm320
    %v322 = vsel %vm321, %v314, %v318
    %v323 = vand.u32 2147483647, %v298
    %vm324 = vcmp.eq.f32.partialorder %v323, 8.507059e+37
    %v325 = vand.u32 %v298, 2147483648
    %v326 = vor.u32 1.1754944e-38, %v325
    %v327 = vsel %vm324, %v326, %v322
    %v328 = vmul.f32 1.0, %v327
    %v329 = vmul.f32 %v289, %v313
    %v330 = vmul.f32 %v290, %v328
    %v331 = vld [vmem:[%s9] sm:$0xff]
    %v332 = vld [vmem:[%s9 + $0x8] sm:$0xff]
    %v333 = vld [vmem:[%s9 + $0x10] sm:$0xff]
    %v334 = vld [vmem:[%s9 + $0x18] sm:$0xff]
    %v335 = vld [vmem:[%s9 + $0x20] sm:$0xff]
    %v336 = vld [vmem:[%s9 + $0x28] sm:$0xff]
    %v337 = vld [vmem:[%s9 + $0x30] sm:$0xff]
    %v338 = vld [vmem:[%s9 + $0x38] sm:$0xff]
    %vm339 = vcmask 523264
    %v341 = vsel %vm339, %v329, 0
    %v344 = vsel %vm339, %v330, 0
    %346 = vmatpush.msra.mxu0 0.0
    %347 = vmatpush.msra.mxu0 0.0
    %348 = vmatpush.msra.mxu0 0.0
    %349 = vmatpush.msra.mxu0 0.0
    %350 = vmatpush.msra.mxu0 0.0
    %351 = vmatpush.msra.mxu0 0.0
    %352 = vmatpush.msra.mxu0 0.0
    %353 = vmatpush.msra.mxu0 0.0
    %354 = vmatpush.msra.mxu0 %v338
    %355 = vmatpush.msra.mxu0 %v337
    %356 = vmatpush.msra.mxu0 %v336
    %357 = vmatpush.msra.mxu0 %v335
    %358 = vmatpush.msra.mxu0 %v334
    %359 = vmatpush.msra.mxu0 %v333
    %360 = vmatpush.msra.mxu0 %v332
    %361 = vmatpush.msra.mxu0 %v331
    %362 = vmatmul.f32.gmra.mxu0 %v341
    %v363 = vpop.f32.mrf.mxu0
    %v364 = vadd.f32 0.0, %v363
    %365 = vmatmul.f32.gmra.mxu0 %v344
    %v366 = vpop.f32.mrf.mxu0
    %v367 = vadd.f32 0.0, %v366
    %368 = vdwg.mxu0
    %v369 = vld [vmem:[%s10] sm:$0x1]
    %v371 = vperm.slane %v369, 0
    %v373 = vadd.f32 %v364, %v371
    %v374 = vadd.f32 %v367, %v371
    %vm375 = vcmp.gt.f32.partialorder %v373, 20.0
    %vm376 = vcmp.gt.f32.partialorder %v374, 20.0
    %v377 = vmul.f32 %v373, 1.442695
    %v378 = vpow.pop %v377
    %v379 = vmul.f32 %v374, 1.442695
    %v380 = vpow.pop %v379
    %v381 = vadd.f32 %v378, 1.0
    %v382 = vadd.f32 %v380, 1.0
    %v383 = vlog2.pop %v381
    %v384 = vmul.f32 %v383, 0.6931472
    %v385 = vlog2.pop %v382
    %v386 = vmul.f32 %v385, 0.6931472
    %v387 = vsel %vm375, %v373, %v384
    %v388 = vsel %vm376, %v374, %v386
    %v389 = vld [vmem:[#allocation7] sm:$0xff]
    %v390 = vld [vmem:[#allocation7 + $0x8] sm:$0xff]
    %v391 = vmul.f32 %v387, %v329
    %v392 = vmul.f32 %v388, %v330
    %v393 = vperm.slane %v387, 0
    %v394 = vperm.slane %v388, 0
    %v395 = vmul.f32 %v393, %v389
    %v396 = vmul.f32 %v393, %v390
    %v397 = vmul.f32 %v394, %v389
    %v398 = vmul.f32 %v394, %v390
    %v399 = vmul.f32 %v395, 1.442695
    %v400 = vpow.pop %v399
    %v401 = vmul.f32 %v396, 1.442695
    %v402 = vpow.pop %v401
    %v403 = vmul.f32 %v397, 1.442695
    %v404 = vpow.pop %v403
    %v405 = vmul.f32 %v398, 1.442695
    %v406 = vpow.pop %v405
    %v407 = vperm.slane %v364, 0
    %v408 = vlaneseq
    %v409 = vshrl.u32 %v408, 7
    %v410 = vadd.s32 %v409, 64
    %411 = vset.pattern.permute.xlu0 %v410
    %412 = vperm.xlu0 %411, %v407
    %v413 = vpop.permute.xlu0 %412
    %v414 = vlaneseq
    %v415 = vshrl.u32 %v414, 7
    %v416 = vadd.s32 %v415, 72
    %417 = vset.pattern.permute.xlu0 %v416
    %418 = vperm.xlu0 %417, %v407
    %v419 = vpop.permute.xlu0 %418
    %v420 = vperm.slane %v367, 0
    %v421 = vlaneseq
    %v422 = vshrl.u32 %v421, 7
    %v423 = vadd.s32 %v422, 64
    %424 = vset.pattern.permute.xlu0 %v423
    %425 = vperm.xlu0 %424, %v420
    %v426 = vpop.permute.xlu0 %425
    %v427 = vlaneseq
    %v428 = vshrl.u32 %v427, 7
    %v429 = vadd.s32 %v428, 72
    %430 = vset.pattern.permute.xlu0 %v429
    %431 = vperm.xlu0 %430, %v420
    %v432 = vpop.permute.xlu0 %431
    %v433 = vperm.slane %v391, 0
    %v434 = vperm.slane %v392, 0
    %v435 = vmul.f32 %v413, %v433
    %v436 = vmul.f32 %v419, %v433
    %v437 = vmul.f32 %v426, %v434
    %v438 = vmul.f32 %v432, %v434
    %v439 = vmul.f32 %v400, 0.0
    %v440 = vmul.f32 %v402, 0.0
    %v441 = vmul.f32 %v404, 0.0
    %v442 = vmul.f32 %v406, 0.0
    %v443 = vadd.f32 %v439, %v435
    %v444 = vadd.f32 %v440, %v436
    %v445 = vadd.f32 %v441, %v437
    %v446 = vadd.f32 %v442, %v438
    %v447 = vlaneseq
    %v448 = vshrl.u32 %v447, 7
    %v449 = vadd.s32 %v448, 80
    %450 = vset.pattern.permute.xlu0 %v449
    %451 = vperm.xlu0 %450, %v407
    %v452 = vpop.permute.xlu0 %451
    %v453 = vlaneseq
    %v454 = vshrl.u32 %v453, 7
    %v455 = vadd.s32 %v454, 88
    %456 = vset.pattern.permute.xlu0 %v455
    %457 = vperm.xlu0 %456, %v407
    %v458 = vpop.permute.xlu0 %457
    %v459 = vlaneseq
    %v460 = vshrl.u32 %v459, 7
    %v461 = vadd.s32 %v460, 80
    %462 = vset.pattern.permute.xlu0 %v461
    %463 = vperm.xlu0 %462, %v420
    %v464 = vpop.permute.xlu0 %463
    %v465 = vlaneseq
    %v466 = vshrl.u32 %v465, 7
    %v467 = vadd.s32 %v466, 88
    %468 = vset.pattern.permute.xlu0 %v467
    %469 = vperm.xlu0 %468, %v420
    %v470 = vpop.permute.xlu0 %469
    %v471 = vmul.f32 %v452, %v443
    %v472 = vmul.f32 %v458, %v444
    %v473 = vmul.f32 %v464, %v445
    %v474 = vmul.f32 %v470, %v446
    %v475 = vsel %vm339, %v471, 0.0
    %v476 = vsel %vm339, %v472, 0.0
    %v477 = vadd.f32 %v475, %v476
    %v478 = vrot.slane %v477, 4
    %v479 = vadd.f32 %v477, %v478
    %v480 = vrot.slane %v479, 2
    %v481 = vadd.f32 %v479, %v480
    %v482 = vrot.slane %v481, 1
    %v483 = vadd.f32 %v481, %v482
    %v484 = vsel %vm339, %v473, 0.0
    %v485 = vsel %vm339, %v474, 0.0
    %v486 = vadd.f32 %v484, %v485
    %v487 = vrot.slane %v486, 4
    %v488 = vadd.f32 %v486, %v487
    %v489 = vrot.slane %v488, 2
    %v490 = vadd.f32 %v488, %v489
    %v491 = vrot.slane %v490, 1
    %v492 = vadd.f32 %v490, %v491
    %v493 = vperm.slane %v387, 1
    %v494 = vperm.slane %v388, 1
    %v495 = vmul.f32 %v493, %v389
    %v496 = vmul.f32 %v493, %v390
    %v497 = vmul.f32 %v494, %v389
    %v498 = vmul.f32 %v494, %v390
    %v499 = vmul.f32 %v495, 1.442695
    %v500 = vpow.pop %v499
    %v501 = vmul.f32 %v496, 1.442695
    %v502 = vpow.pop %v501
    %v503 = vmul.f32 %v497, 1.442695
    %v504 = vpow.pop %v503
    %v505 = vmul.f32 %v498, 1.442695
    %v506 = vpow.pop %v505
    %v507 = vperm.slane %v364, 1
    %v508 = vlaneseq
    %v509 = vshrl.u32 %v508, 7
    %v510 = vadd.s32 %v509, 64
    %511 = vset.pattern.permute.xlu0 %v510
    %512 = vperm.xlu0 %511, %v507
    %v513 = vpop.permute.xlu0 %512
    %v514 = vlaneseq
    %v515 = vshrl.u32 %v514, 7
    %v516 = vadd.s32 %v515, 72
    %517 = vset.pattern.permute.xlu0 %v516
    %518 = vperm.xlu0 %517, %v507
    %v519 = vpop.permute.xlu0 %518
    %v520 = vperm.slane %v367, 1
    %v521 = vlaneseq
    %v522 = vshrl.u32 %v521, 7
    %v523 = vadd.s32 %v522, 64
    %524 = vset.pattern.permute.xlu0 %v523
    %525 = vperm.xlu0 %524, %v520
    %v526 = vpop.permute.xlu0 %525
    %v527 = vlaneseq
    %v528 = vshrl.u32 %v527, 7
    %v529 = vadd.s32 %v528, 72
    %530 = vset.pattern.permute.xlu0 %v529
    %531 = vperm.xlu0 %530, %v520
    %v532 = vpop.permute.xlu0 %531
    %v533 = vperm.slane %v391, 1
    %v534 = vperm.slane %v392, 1
    %v535 = vmul.f32 %v513, %v533
    %v536 = vmul.f32 %v519, %v533
    %v537 = vmul.f32 %v526, %v534
    %v538 = vmul.f32 %v532, %v534
    %v539 = vmul.f32 %v500, %v443
    %v540 = vmul.f32 %v502, %v444
    %v541 = vmul.f32 %v504, %v445
    %v542 = vmul.f32 %v506, %v446
    %v543 = vadd.f32 %v539, %v535
    %v544 = vadd.f32 %v540, %v536
    %v545 = vadd.f32 %v541, %v537
    %v546 = vadd.f32 %v542, %v538
    %v547 = vlaneseq
    %v548 = vshrl.u32 %v547, 7
    %v549 = vadd.s32 %v548, 80
    %550 = vset.pattern.permute.xlu0 %v549
    %551 = vperm.xlu0 %550, %v507
    %v552 = vpop.permute.xlu0 %551
    %v553 = vlaneseq
    %v554 = vshrl.u32 %v553, 7
    %v555 = vadd.s32 %v554, 88
    %556 = vset.pattern.permute.xlu0 %v555
    %557 = vperm.xlu0 %556, %v507
    %v558 = vpop.permute.xlu0 %557
    %v559 = vlaneseq
    %v560 = vshrl.u32 %v559, 7
    %v561 = vadd.s32 %v560, 80
    %562 = vset.pattern.permute.xlu0 %v561
    %563 = vperm.xlu0 %562, %v520
    %v564 = vpop.permute.xlu0 %563
    %v565 = vlaneseq
    %v566 = vshrl.u32 %v565, 7
    %v567 = vadd.s32 %v566, 88
    %568 = vset.pattern.permute.xlu0 %v567
    %569 = vperm.xlu0 %568, %v520
    %v570 = vpop.permute.xlu0 %569
    %v571 = vmul.f32 %v552, %v543
    %v572 = vmul.f32 %v558, %v544
    %v573 = vmul.f32 %v564, %v545
    %v574 = vmul.f32 %v570, %v546
    %v575 = vsel %vm339, %v571, 0.0
    %v576 = vsel %vm339, %v572, 0.0
    %v577 = vadd.f32 %v575, %v576
    %v578 = vrot.slane %v577, 4
    %v579 = vadd.f32 %v577, %v578
    %v580 = vrot.slane %v579, 2
    %v581 = vadd.f32 %v579, %v580
    %v582 = vrot.slane %v581, 1
    %v583 = vadd.f32 %v581, %v582
    %v584 = vsel %vm339, %v573, 0.0
    %v585 = vsel %vm339, %v574, 0.0
    %v586 = vadd.f32 %v584, %v585
    %v587 = vrot.slane %v586, 4
    %v588 = vadd.f32 %v586, %v587
    %v589 = vrot.slane %v588, 2
    %v590 = vadd.f32 %v588, %v589
    %v591 = vrot.slane %v590, 1
    %v592 = vadd.f32 %v590, %v591
    %v593 = vperm.slane %v387, 2
    %v594 = vperm.slane %v388, 2
    %v595 = vmul.f32 %v593, %v389
    %v596 = vmul.f32 %v593, %v390
    %v597 = vmul.f32 %v594, %v389
    %v598 = vmul.f32 %v594, %v390
    %v599 = vmul.f32 %v595, 1.442695
    %v600 = vpow.pop %v599
    %v601 = vmul.f32 %v596, 1.442695
    %v602 = vpow.pop %v601
    %v603 = vmul.f32 %v597, 1.442695
    %v604 = vpow.pop %v603
    %v605 = vmul.f32 %v598, 1.442695
    %v606 = vpow.pop %v605
    %v607 = vperm.slane %v364, 2
    %v608 = vlaneseq
    %v609 = vshrl.u32 %v608, 7
    %v610 = vadd.s32 %v609, 64
    %611 = vset.pattern.permute.xlu0 %v610
    %612 = vperm.xlu0 %611, %v607
    %v613 = vpop.permute.xlu0 %612
    %v614 = vlaneseq
    %v615 = vshrl.u32 %v614, 7
    %v616 = vadd.s32 %v615, 72
    %617 = vset.pattern.permute.xlu0 %v616
    %618 = vperm.xlu0 %617, %v607
    %v619 = vpop.permute.xlu0 %618
    %v620 = vperm.slane %v367, 2
    %v621 = vlaneseq
    %v622 = vshrl.u32 %v621, 7
    %v623 = vadd.s32 %v622, 64
    %624 = vset.pattern.permute.xlu0 %v623
    %625 = vperm.xlu0 %624, %v620
    %v626 = vpop.permute.xlu0 %625
    %v627 = vlaneseq
    %v628 = vshrl.u32 %v627, 7
    %v629 = vadd.s32 %v628, 72
    %630 = vset.pattern.permute.xlu0 %v629
    %631 = vperm.xlu0 %630, %v620
    %v632 = vpop.permute.xlu0 %631
    %v633 = vperm.slane %v391, 2
    %v634 = vperm.slane %v392, 2
    %v635 = vmul.f32 %v613, %v633
    %v636 = vmul.f32 %v619, %v633
    %v637 = vmul.f32 %v626, %v634
    %v638 = vmul.f32 %v632, %v634
    %v639 = vmul.f32 %v600, %v543
    %v640 = vmul.f32 %v602, %v544
    %v641 = vmul.f32 %v604, %v545
    %v642 = vmul.f32 %v606, %v546
    %v643 = vadd.f32 %v639, %v635
    %v644 = vadd.f32 %v640, %v636
    %v645 = vadd.f32 %v641, %v637
    %v646 = vadd.f32 %v642, %v638
    %v647 = vlaneseq
    %v648 = vshrl.u32 %v647, 7
    %v649 = vadd.s32 %v648, 80
    %650 = vset.pattern.permute.xlu0 %v649
    %651 = vperm.xlu0 %650, %v607
    %v652 = vpop.permute.xlu0 %651
    %v653 = vlaneseq
    %v654 = vshrl.u32 %v653, 7
    %v655 = vadd.s32 %v654, 88
    %656 = vset.pattern.permute.xlu0 %v655
    %657 = vperm.xlu0 %656, %v607
    %v658 = vpop.permute.xlu0 %657
    %v659 = vlaneseq
    %v660 = vshrl.u32 %v659, 7
    %v661 = vadd.s32 %v660, 80
    %662 = vset.pattern.permute.xlu0 %v661
    %663 = vperm.xlu0 %662, %v620
    %v664 = vpop.permute.xlu0 %663
    %v665 = vlaneseq
    %v666 = vshrl.u32 %v665, 7
    %v667 = vadd.s32 %v666, 88
    %668 = vset.pattern.permute.xlu0 %v667
    %669 = vperm.xlu0 %668, %v620
    %v670 = vpop.permute.xlu0 %669
    %v671 = vmul.f32 %v652, %v643
    %v672 = vmul.f32 %v658, %v644
    %v673 = vmul.f32 %v664, %v645
    %v674 = vmul.f32 %v670, %v646
    %v675 = vsel %vm339, %v671, 0.0
    %v676 = vsel %vm339, %v672, 0.0
    %v677 = vadd.f32 %v675, %v676
    %v678 = vrot.slane %v677, 4
    %v679 = vadd.f32 %v677, %v678
    %v680 = vrot.slane %v679, 2
    %v681 = vadd.f32 %v679, %v680
    %v682 = vrot.slane %v681, 1
    %v683 = vadd.f32 %v681, %v682
    %v684 = vsel %vm339, %v673, 0.0
    %v685 = vsel %vm339, %v674, 0.0
    %v686 = vadd.f32 %v684, %v685
    %v687 = vrot.slane %v686, 4
    %v688 = vadd.f32 %v686, %v687
    %v689 = vrot.slane %v688, 2
    %v690 = vadd.f32 %v688, %v689
    %v691 = vrot.slane %v690, 1
    %v692 = vadd.f32 %v690, %v691
    %v693 = vperm.slane %v387, 3
    %v694 = vperm.slane %v388, 3
    %v695 = vmul.f32 %v693, %v389
    %v696 = vmul.f32 %v693, %v390
    %v697 = vmul.f32 %v694, %v389
    %v698 = vmul.f32 %v694, %v390
    %v699 = vmul.f32 %v695, 1.442695
    %v700 = vpow.pop %v699
    %v701 = vmul.f32 %v696, 1.442695
    %v702 = vpow.pop %v701
    %v703 = vmul.f32 %v697, 1.442695
    %v704 = vpow.pop %v703
    %v705 = vmul.f32 %v698, 1.442695
    %v706 = vpow.pop %v705
    %v707 = vperm.slane %v364, 3
    %v708 = vlaneseq
    %v709 = vshrl.u32 %v708, 7
    %v710 = vadd.s32 %v709, 64
    %711 = vset.pattern.permute.xlu0 %v710
    %712 = vperm.xlu0 %711, %v707
    %v713 = vpop.permute.xlu0 %712
    %v714 = vlaneseq
    %v715 = vshrl.u32 %v714, 7
    %v716 = vadd.s32 %v715, 72
    %717 = vset.pattern.permute.xlu0 %v716
    %718 = vperm.xlu0 %717, %v707
    %v719 = vpop.permute.xlu0 %718
    %v720 = vperm.slane %v367, 3
    %v721 = vlaneseq
    %v722 = vshrl.u32 %v721, 7
    %v723 = vadd.s32 %v722, 64
    %724 = vset.pattern.permute.xlu0 %v723
    %725 = vperm.xlu0 %724, %v720
    %v726 = vpop.permute.xlu0 %725
    %v727 = vlaneseq
    %v728 = vshrl.u32 %v727, 7
    %v729 = vadd.s32 %v728, 72
    %730 = vset.pattern.permute.xlu0 %v729
    %731 = vperm.xlu0 %730, %v720
    %v732 = vpop.permute.xlu0 %731
    %v733 = vperm.slane %v391, 3
    %v734 = vperm.slane %v392, 3
    %v735 = vmul.f32 %v713, %v733
    %v736 = vmul.f32 %v719, %v733
    %v737 = vmul.f32 %v726, %v734
    %v738 = vmul.f32 %v732, %v734
    %v739 = vmul.f32 %v700, %v643
    %v740 = vmul.f32 %v702, %v644
    %v741 = vmul.f32 %v704, %v645
    %v742 = vmul.f32 %v706, %v646
    %v743 = vadd.f32 %v739, %v735
    %v744 = vadd.f32 %v740, %v736
    %v745 = vadd.f32 %v741, %v737
    %v746 = vadd.f32 %v742, %v738
    %v747 = vlaneseq
    %v748 = vshrl.u32 %v747, 7
    %v749 = vadd.s32 %v748, 80
    %750 = vset.pattern.permute.xlu0 %v749
    %751 = vperm.xlu0 %750, %v707
    %v752 = vpop.permute.xlu0 %751
    %v753 = vlaneseq
    %v754 = vshrl.u32 %v753, 7
    %v755 = vadd.s32 %v754, 88
    %756 = vset.pattern.permute.xlu0 %v755
    %757 = vperm.xlu0 %756, %v707
    %v758 = vpop.permute.xlu0 %757
    %v759 = vlaneseq
    %v760 = vshrl.u32 %v759, 7
    %v761 = vadd.s32 %v760, 80
    %762 = vset.pattern.permute.xlu0 %v761
    %763 = vperm.xlu0 %762, %v720
    %v764 = vpop.permute.xlu0 %763
    %v765 = vlaneseq
    %v766 = vshrl.u32 %v765, 7
    %v767 = vadd.s32 %v766, 88
    %768 = vset.pattern.permute.xlu0 %v767
    %769 = vperm.xlu0 %768, %v720
    %v770 = vpop.permute.xlu0 %769
    %v771 = vmul.f32 %v752, %v743
    %v772 = vmul.f32 %v758, %v744
    %v773 = vmul.f32 %v764, %v745
    %v774 = vmul.f32 %v770, %v746
    %v775 = vsel %vm339, %v771, 0.0
    %v776 = vsel %vm339, %v772, 0.0
    %v777 = vadd.f32 %v775, %v776
    %v778 = vrot.slane %v777, 4
    %v779 = vadd.f32 %v777, %v778
    %v780 = vrot.slane %v779, 2
    %v781 = vadd.f32 %v779, %v780
    %v782 = vrot.slane %v781, 1
    %v783 = vadd.f32 %v781, %v782
    %v784 = vsel %vm339, %v773, 0.0
    %v785 = vsel %vm339, %v774, 0.0
    %v786 = vadd.f32 %v784, %v785
    %v787 = vrot.slane %v786, 4
    %v788 = vadd.f32 %v786, %v787
    %v789 = vrot.slane %v788, 2
    %v790 = vadd.f32 %v788, %v789
    %v791 = vrot.slane %v790, 1
    %v792 = vadd.f32 %v790, %v791
    %v793 = vperm.slane %v387, 4
    %v794 = vperm.slane %v388, 4
    %v795 = vmul.f32 %v793, %v389
    %v796 = vmul.f32 %v793, %v390
    %v797 = vmul.f32 %v794, %v389
    %v798 = vmul.f32 %v794, %v390
    %v799 = vmul.f32 %v795, 1.442695
    %v800 = vpow.pop %v799
    %v801 = vmul.f32 %v796, 1.442695
    %v802 = vpow.pop %v801
    %v803 = vmul.f32 %v797, 1.442695
    %v804 = vpow.pop %v803
    %v805 = vmul.f32 %v798, 1.442695
    %v806 = vpow.pop %v805
    %v807 = vperm.slane %v364, 4
    %v808 = vlaneseq
    %v809 = vshrl.u32 %v808, 7
    %v810 = vadd.s32 %v809, 64
    %811 = vset.pattern.permute.xlu0 %v810
    %812 = vperm.xlu0 %811, %v807
    %v813 = vpop.permute.xlu0 %812
    %v814 = vlaneseq
    %v815 = vshrl.u32 %v814, 7
    %v816 = vadd.s32 %v815, 72
    %817 = vset.pattern.permute.xlu0 %v816
    %818 = vperm.xlu0 %817, %v807
    %v819 = vpop.permute.xlu0 %818
    %v820 = vperm.slane %v367, 4
    %v821 = vlaneseq
    %v822 = vshrl.u32 %v821, 7
    %v823 = vadd.s32 %v822, 64
    %824 = vset.pattern.permute.xlu0 %v823
    %825 = vperm.xlu0 %824, %v820
    %v826 = vpop.permute.xlu0 %825
    %v827 = vlaneseq
    %v828 = vshrl.u32 %v827, 7
    %v829 = vadd.s32 %v828, 72
    %830 = vset.pattern.permute.xlu0 %v829
    %831 = vperm.xlu0 %830, %v820
    %v832 = vpop.permute.xlu0 %831
    %v833 = vperm.slane %v391, 4
    %v834 = vperm.slane %v392, 4
    %v835 = vmul.f32 %v813, %v833
    %v836 = vmul.f32 %v819, %v833
    %v837 = vmul.f32 %v826, %v834
    %v838 = vmul.f32 %v832, %v834
    %v839 = vmul.f32 %v800, %v743
    %v840 = vmul.f32 %v802, %v744
    %v841 = vmul.f32 %v804, %v745
    %v842 = vmul.f32 %v806, %v746
    %v843 = vadd.f32 %v839, %v835
    %v844 = vadd.f32 %v840, %v836
    %v845 = vadd.f32 %v841, %v837
    %v846 = vadd.f32 %v842, %v838
    %v847 = vlaneseq
    %v848 = vshrl.u32 %v847, 7
    %v849 = vadd.s32 %v848, 80
    %850 = vset.pattern.permute.xlu0 %v849
    %851 = vperm.xlu0 %850, %v807
    %v852 = vpop.permute.xlu0 %851
    %v853 = vlaneseq
    %v854 = vshrl.u32 %v853, 7
    %v855 = vadd.s32 %v854, 88
    %856 = vset.pattern.permute.xlu0 %v855
    %857 = vperm.xlu0 %856, %v807
    %v858 = vpop.permute.xlu0 %857
    %v859 = vlaneseq
    %v860 = vshrl.u32 %v859, 7
    %v861 = vadd.s32 %v860, 80
    %862 = vset.pattern.permute.xlu0 %v861
    %863 = vperm.xlu0 %862, %v820
    %v864 = vpop.permute.xlu0 %863
    %v865 = vlaneseq
    %v866 = vshrl.u32 %v865, 7
    %v867 = vadd.s32 %v866, 88
    %868 = vset.pattern.permute.xlu0 %v867
    %869 = vperm.xlu0 %868, %v820
    %v870 = vpop.permute.xlu0 %869
    %v871 = vmul.f32 %v852, %v843
    %v872 = vmul.f32 %v858, %v844
    %v873 = vmul.f32 %v864, %v845
    %v874 = vmul.f32 %v870, %v846
    %v875 = vsel %vm339, %v871, 0.0
    %v876 = vsel %vm339, %v872, 0.0
    %v877 = vadd.f32 %v875, %v876
    %v878 = vrot.slane %v877, 4
    %v879 = vadd.f32 %v877, %v878
    %v880 = vrot.slane %v879, 2
    %v881 = vadd.f32 %v879, %v880
    %v882 = vrot.slane %v881, 1
    %v883 = vadd.f32 %v881, %v882
    %v884 = vsel %vm339, %v873, 0.0
    %v885 = vsel %vm339, %v874, 0.0
    %v886 = vadd.f32 %v884, %v885
    %v887 = vrot.slane %v886, 4
    %v888 = vadd.f32 %v886, %v887
    %v889 = vrot.slane %v888, 2
    %v890 = vadd.f32 %v888, %v889
    %v891 = vrot.slane %v890, 1
    %v892 = vadd.f32 %v890, %v891
    %v893 = vperm.slane %v387, 5
    %v894 = vperm.slane %v388, 5
    %v895 = vmul.f32 %v893, %v389
    %v896 = vmul.f32 %v893, %v390
    %v897 = vmul.f32 %v894, %v389
    %v898 = vmul.f32 %v894, %v390
    %v899 = vmul.f32 %v895, 1.442695
    %v900 = vpow.pop %v899
    %v901 = vmul.f32 %v896, 1.442695
    %v902 = vpow.pop %v901
    %v903 = vmul.f32 %v897, 1.442695
    %v904 = vpow.pop %v903
    %v905 = vmul.f32 %v898, 1.442695
    %v906 = vpow.pop %v905
    %v907 = vperm.slane %v364, 5
    %v908 = vlaneseq
    %v909 = vshrl.u32 %v908, 7
    %v910 = vadd.s32 %v909, 64
    %911 = vset.pattern.permute.xlu0 %v910
    %912 = vperm.xlu0 %911, %v907
    %v913 = vpop.permute.xlu0 %912
    %v914 = vlaneseq
    %v915 = vshrl.u32 %v914, 7
    %v916 = vadd.s32 %v915, 72
    %917 = vset.pattern.permute.xlu0 %v916
    %918 = vperm.xlu0 %917, %v907
    %v919 = vpop.permute.xlu0 %918
    %v920 = vperm.slane %v367, 5
    %v921 = vlaneseq
    %v922 = vshrl.u32 %v921, 7
    %v923 = vadd.s32 %v922, 64
    %924 = vset.pattern.permute.xlu0 %v923
    %925 = vperm.xlu0 %924, %v920
    %v926 = vpop.permute.xlu0 %925
    %v927 = vlaneseq
    %v928 = vshrl.u32 %v927, 7
    %v929 = vadd.s32 %v928, 72
    %930 = vset.pattern.permute.xlu0 %v929
    %931 = vperm.xlu0 %930, %v920
    %v932 = vpop.permute.xlu0 %931
    %v933 = vperm.slane %v391, 5
    %v934 = vperm.slane %v392, 5
    %v935 = vmul.f32 %v913, %v933
    %v936 = vmul.f32 %v919, %v933
    %v937 = vmul.f32 %v926, %v934
    %v938 = vmul.f32 %v932, %v934
    %v939 = vmul.f32 %v900, %v843
    %v940 = vmul.f32 %v902, %v844
    %v941 = vmul.f32 %v904, %v845
    %v942 = vmul.f32 %v906, %v846
    %v943 = vadd.f32 %v939, %v935
    %v944 = vadd.f32 %v940, %v936
    %v945 = vadd.f32 %v941, %v937
    %v946 = vadd.f32 %v942, %v938
    %v947 = vlaneseq
    %v948 = vshrl.u32 %v947, 7
    %v949 = vadd.s32 %v948, 80
    %950 = vset.pattern.permute.xlu0 %v949
    %951 = vperm.xlu0 %950, %v907
    %v952 = vpop.permute.xlu0 %951
    %v953 = vlaneseq
    %v954 = vshrl.u32 %v953, 7
    %v955 = vadd.s32 %v954, 88
    %956 = vset.pattern.permute.xlu0 %v955
    %957 = vperm.xlu0 %956, %v907
    %v958 = vpop.permute.xlu0 %957
    %v959 = vlaneseq
    %v960 = vshrl.u32 %v959, 7
    %v961 = vadd.s32 %v960, 80
    %962 = vset.pattern.permute.xlu0 %v961
    %963 = vperm.xlu0 %962, %v920
    %v964 = vpop.permute.xlu0 %963
    %v965 = vlaneseq
    %v966 = vshrl.u32 %v965, 7
    %v967 = vadd.s32 %v966, 88
    %968 = vset.pattern.permute.xlu0 %v967
    %969 = vperm.xlu0 %968, %v920
    %v970 = vpop.permute.xlu0 %969
    %v971 = vmul.f32 %v952, %v943
    %v972 = vmul.f32 %v958, %v944
    %v973 = vmul.f32 %v964, %v945
    %v974 = vmul.f32 %v970, %v946
    %v975 = vsel %vm339, %v971, 0.0
    %v976 = vsel %vm339, %v972, 0.0
    %v977 = vadd.f32 %v975, %v976
    %v978 = vrot.slane %v977, 4
    %v979 = vadd.f32 %v977, %v978
    %v980 = vrot.slane %v979, 2
    %v981 = vadd.f32 %v979, %v980
    %v982 = vrot.slane %v981, 1
    %v983 = vadd.f32 %v981, %v982
    %v984 = vsel %vm339, %v973, 0.0
    %v985 = vsel %vm339, %v974, 0.0
    %v986 = vadd.f32 %v984, %v985
    %v987 = vrot.slane %v986, 4
    %v988 = vadd.f32 %v986, %v987
    %v989 = vrot.slane %v988, 2
    %v990 = vadd.f32 %v988, %v989
    %v991 = vrot.slane %v990, 1
    %v992 = vadd.f32 %v990, %v991
    %v993 = vperm.slane %v387, 6
    %v994 = vperm.slane %v388, 6
    %v995 = vmul.f32 %v993, %v389
    %v996 = vmul.f32 %v993, %v390
    %v997 = vmul.f32 %v994, %v389
    %v998 = vmul.f32 %v994, %v390
    %v999 = vmul.f32 %v995, 1.442695
    %v1000 = vpow.pop %v999
    %v1001 = vmul.f32 %v996, 1.442695
    %v1002 = vpow.pop %v1001
    %v1003 = vmul.f32 %v997, 1.442695
    %v1004 = vpow.pop %v1003
    %v1005 = vmul.f32 %v998, 1.442695
    %v1006 = vpow.pop %v1005
    %v1007 = vperm.slane %v364, 6
    %v1008 = vlaneseq
    %v1009 = vshrl.u32 %v1008, 7
    %v1010 = vadd.s32 %v1009, 64
    %1011 = vset.pattern.permute.xlu0 %v1010
    %1012 = vperm.xlu0 %1011, %v1007
    %v1013 = vpop.permute.xlu0 %1012
    %v1014 = vlaneseq
    %v1015 = vshrl.u32 %v1014, 7
    %v1016 = vadd.s32 %v1015, 72
    %1017 = vset.pattern.permute.xlu0 %v1016
    %1018 = vperm.xlu0 %1017, %v1007
    %v1019 = vpop.permute.xlu0 %1018
    %v1020 = vperm.slane %v367, 6
    %v1021 = vlaneseq
    %v1022 = vshrl.u32 %v1021, 7
    %v1023 = vadd.s32 %v1022, 64
    %1024 = vset.pattern.permute.xlu0 %v1023
    %1025 = vperm.xlu0 %1024, %v1020
    %v1026 = vpop.permute.xlu0 %1025
    %v1027 = vlaneseq
    %v1028 = vshrl.u32 %v1027, 7
    %v1029 = vadd.s32 %v1028, 72
    %1030 = vset.pattern.permute.xlu0 %v1029
    %1031 = vperm.xlu0 %1030, %v1020
    %v1032 = vpop.permute.xlu0 %1031
    %v1033 = vperm.slane %v391, 6
    %v1034 = vperm.slane %v392, 6
    %v1035 = vmul.f32 %v1013, %v1033
    %v1036 = vmul.f32 %v1019, %v1033
    %v1037 = vmul.f32 %v1026, %v1034
    %v1038 = vmul.f32 %v1032, %v1034
    %v1039 = vmul.f32 %v1000, %v943
    %v1040 = vmul.f32 %v1002, %v944
    %v1041 = vmul.f32 %v1004, %v945
    %v1042 = vmul.f32 %v1006, %v946
    %v1043 = vadd.f32 %v1039, %v1035
    %v1044 = vadd.f32 %v1040, %v1036
    %v1045 = vadd.f32 %v1041, %v1037
    %v1046 = vadd.f32 %v1042, %v1038
    %v1047 = vlaneseq
    %v1048 = vshrl.u32 %v1047, 7
    %v1049 = vadd.s32 %v1048, 80
    %1050 = vset.pattern.permute.xlu0 %v1049
    %1051 = vperm.xlu0 %1050, %v1007
    %v1052 = vpop.permute.xlu0 %1051
    %v1053 = vlaneseq
    %v1054 = vshrl.u32 %v1053, 7
    %v1055 = vadd.s32 %v1054, 88
    %1056 = vset.pattern.permute.xlu0 %v1055
    %1057 = vperm.xlu0 %1056, %v1007
    %v1058 = vpop.permute.xlu0 %1057
    %v1059 = vlaneseq
    %v1060 = vshrl.u32 %v1059, 7
    %v1061 = vadd.s32 %v1060, 80
    %1062 = vset.pattern.permute.xlu0 %v1061
    %1063 = vperm.xlu0 %1062, %v1020
    %v1064 = vpop.permute.xlu0 %1063
    %v1065 = vlaneseq
    %v1066 = vshrl.u32 %v1065, 7
    %v1067 = vadd.s32 %v1066, 88
    %1068 = vset.pattern.permute.xlu0 %v1067
    %1069 = vperm.xlu0 %1068, %v1020
    %v1070 = vpop.permute.xlu0 %1069
    %v1071 = vmul.f32 %v1052, %v1043
    %v1072 = vmul.f32 %v1058, %v1044
    %v1073 = vmul.f32 %v1064, %v1045
    %v1074 = vmul.f32 %v1070, %v1046
    %v1075 = vsel %vm339, %v1071, 0.0
    %v1076 = vsel %vm339, %v1072, 0.0
    %v1077 = vadd.f32 %v1075, %v1076
    %v1078 = vrot.slane %v1077, 4
    %v1079 = vadd.f32 %v1077, %v1078
    %v1080 = vrot.slane %v1079, 2
    %v1081 = vadd.f32 %v1079, %v1080
    %v1082 = vrot.slane %v1081, 1
    %v1083 = vadd.f32 %v1081, %v1082
    %v1084 = vsel %vm339, %v1073, 0.0
    %v1085 = vsel %vm339, %v1074, 0.0
    %v1086 = vadd.f32 %v1084, %v1085
    %v1087 = vrot.slane %v1086, 4
    %v1088 = vadd.f32 %v1086, %v1087
    %v1089 = vrot.slane %v1088, 2
    %v1090 = vadd.f32 %v1088, %v1089
    %v1091 = vrot.slane %v1090, 1
    %v1092 = vadd.f32 %v1090, %v1091
    %v1093 = vperm.slane %v387, 7
    %v1094 = vperm.slane %v388, 7
    %v1095 = vmul.f32 %v1093, %v389
    %v1096 = vmul.f32 %v1093, %v390
    %v1097 = vmul.f32 %v1094, %v389
    %v1098 = vmul.f32 %v1094, %v390
    %v1099 = vmul.f32 %v1095, 1.442695
    %v1100 = vpow.pop %v1099
    %v1101 = vmul.f32 %v1096, 1.442695
    %v1102 = vpow.pop %v1101
    %v1103 = vmul.f32 %v1097, 1.442695
    %v1104 = vpow.pop %v1103
    %v1105 = vmul.f32 %v1098, 1.442695
    %v1106 = vpow.pop %v1105
    %v1107 = vperm.slane %v364, 7
    %v1108 = vlaneseq
    %v1109 = vshrl.u32 %v1108, 7
    %v1110 = vadd.s32 %v1109, 64
    %1111 = vset.pattern.permute.xlu0 %v1110
    %1112 = vperm.xlu0 %1111, %v1107
    %v1113 = vpop.permute.xlu0 %1112
    %v1114 = vlaneseq
    %v1115 = vshrl.u32 %v1114, 7
    %v1116 = vadd.s32 %v1115, 72
    %1117 = vset.pattern.permute.xlu0 %v1116
    %1118 = vperm.xlu0 %1117, %v1107
    %v1119 = vpop.permute.xlu0 %1118
    %v1120 = vperm.slane %v367, 7
    %v1121 = vlaneseq
    %v1122 = vshrl.u32 %v1121, 7
    %v1123 = vadd.s32 %v1122, 64
    %1124 = vset.pattern.permute.xlu0 %v1123
    %1125 = vperm.xlu0 %1124, %v1120
    %v1126 = vpop.permute.xlu0 %1125
    %v1127 = vlaneseq
    %v1128 = vshrl.u32 %v1127, 7
    %v1129 = vadd.s32 %v1128, 72
    %1130 = vset.pattern.permute.xlu0 %v1129
    %1131 = vperm.xlu0 %1130, %v1120
    %v1132 = vpop.permute.xlu0 %1131
    %v1133 = vperm.slane %v391, 7
    %v1134 = vperm.slane %v392, 7
    %v1135 = vmul.f32 %v1113, %v1133
    %v1136 = vmul.f32 %v1119, %v1133
    %v1137 = vmul.f32 %v1126, %v1134
    %v1138 = vmul.f32 %v1132, %v1134
    %v1139 = vmul.f32 %v1100, %v1043
    %v1140 = vmul.f32 %v1102, %v1044
    %v1141 = vmul.f32 %v1104, %v1045
    %v1142 = vmul.f32 %v1106, %v1046
    %v1143 = vadd.f32 %v1139, %v1135
    %v1144 = vadd.f32 %v1140, %v1136
    %v1145 = vadd.f32 %v1141, %v1137
    %v1146 = vadd.f32 %v1142, %v1138
    %v1147 = vlaneseq
    %v1148 = vshrl.u32 %v1147, 7
    %v1149 = vadd.s32 %v1148, 80
    %1150 = vset.pattern.permute.xlu0 %v1149
    %1151 = vperm.xlu0 %1150, %v1107
    %v1152 = vpop.permute.xlu0 %1151
    %v1153 = vlaneseq
    %v1154 = vshrl.u32 %v1153, 7
    %v1155 = vadd.s32 %v1154, 88
    %1156 = vset.pattern.permute.xlu0 %v1155
    %1157 = vperm.xlu0 %1156, %v1107
    %v1158 = vpop.permute.xlu0 %1157
    %v1159 = vlaneseq
    %v1160 = vshrl.u32 %v1159, 7
    %v1161 = vadd.s32 %v1160, 80
    %1162 = vset.pattern.permute.xlu0 %v1161
    %1163 = vperm.xlu0 %1162, %v1120
    %v1164 = vpop.permute.xlu0 %1163
    %v1165 = vlaneseq
    %v1166 = vshrl.u32 %v1165, 7
    %v1167 = vadd.s32 %v1166, 88
    %1168 = vset.pattern.permute.xlu0 %v1167
    %1169 = vperm.xlu0 %1168, %v1120
    %v1170 = vpop.permute.xlu0 %1169
    %v1171 = vmul.f32 %v1152, %v1143
    %v1172 = vmul.f32 %v1158, %v1144
    %v1173 = vmul.f32 %v1164, %v1145
    %v1174 = vmul.f32 %v1170, %v1146
    %v1175 = vsel %vm339, %v1171, 0.0
    %v1176 = vsel %vm339, %v1172, 0.0
    %v1177 = vadd.f32 %v1175, %v1176
    %v1178 = vrot.slane %v1177, 4
    %v1179 = vadd.f32 %v1177, %v1178
    %v1180 = vrot.slane %v1179, 2
    %v1181 = vadd.f32 %v1179, %v1180
    %v1182 = vrot.slane %v1181, 1
    %v1183 = vadd.f32 %v1181, %v1182
    %v1184 = vsel %vm339, %v1173, 0.0
    %v1185 = vsel %vm339, %v1174, 0.0
    %v1186 = vadd.f32 %v1184, %v1185
    %v1187 = vrot.slane %v1186, 4
    %v1188 = vadd.f32 %v1186, %v1187
    %v1189 = vrot.slane %v1188, 2
    %v1190 = vadd.f32 %v1188, %v1189
    %v1191 = vrot.slane %v1190, 1
    %v1192 = vadd.f32 %v1190, %v1191
    %vm1193 = vcmask 1040384
    %v1194 = vsel %vm1193, %v483, %v583
    %v1195 = vsel %vm1193, %v492, %v592
    %vm1196 = vcmask 1041408
    %v1197 = vsel %vm1196, %v1194, %v683
    %v1198 = vsel %vm1196, %v1195, %v692
    %vm1199 = vcmask 1042432
    %v1200 = vsel %vm1199, %v1197, %v783
    %v1201 = vsel %vm1199, %v1198, %v792
    %vm1202 = vcmask 1043456
    %v1203 = vsel %vm1202, %v1200, %v883
    %v1204 = vsel %vm1202, %v1201, %v892
    %vm1205 = vcmask 1044480
    %v1206 = vsel %vm1205, %v1203, %v983
    %v1207 = vsel %vm1205, %v1204, %v992
    %vm1208 = vcmask 1045504
    %v1209 = vsel %vm1208, %v1206, %v1083
    %v1210 = vsel %vm1208, %v1207, %v1092
    %vm1211 = vcmask 1046528
    %v1212 = vsel %vm1211, %v1209, %v1183
    %v1213 = vsel %vm1211, %v1210, %v1192
    %v1214 = vld [vmem:[%s12] sm:$0x1]
    %v1216 = vperm.slane %v1214, 0
    %v1218 = vmul.f32 %v329, %v1216
    %v1219 = vmul.f32 %v330, %v1216
    %v1220 = vadd.f32 %v1212, %v1218
    %v1221 = vadd.f32 %v1213, %v1219
    %v1222 = vsub.f32 0.0, %v207
    %v1223 = vsub.f32 0.0, %v210
    %v1224 = vmul.f32 %v1222, 1.442695
    %v1225 = vpow.pop %v1224
    %v1226 = vmul.f32 %v1223, 1.442695
    %v1227 = vpow.pop %v1226
    %v1228 = vadd.f32 %v1225, 1.0
    %v1229 = vadd.f32 %v1227, 1.0
    %v1230 = vrcp.pop %v1228
    %v1231 = vmul.f32 %v1228, %v1230
    %v1232 = vsub.f32 1.0, %v1231
    %v1233 = vmul.f32 %v1230, %v1232
    %v1234 = vadd.f32 %v1230, %v1233
    %vm1235 = vweird.f32 %v1228
    %vm1236 = vweird.f32 %v1230
    %vm1237 = vmor %vm1235, %vm1236
    %v1238 = vsel %vm1237, %v1230, %v1234
    %v1239 = vand.u32 2147483647, %v1228
    %vm1240 = vcmp.eq.f32.partialorder %v1239, 8.507059e+37
    %v1241 = vand.u32 %v1228, 2147483648
    %v1242 = vor.u32 1.1754944e-38, %v1241
    %v1243 = vsel %vm1240, %v1242, %v1238
    %v1244 = vmul.f32 1.0, %v1243
    %v1245 = vrcp.pop %v1229
    %v1246 = vmul.f32 %v1229, %v1245
    %v1247 = vsub.f32 1.0, %v1246
    %v1248 = vmul.f32 %v1245, %v1247
    %v1249 = vadd.f32 %v1245, %v1248
    %vm1250 = vweird.f32 %v1229
    %vm1251 = vweird.f32 %v1245
    %vm1252 = vmor %vm1250, %vm1251
    %v1253 = vsel %vm1252, %v1245, %v1249
    %v1254 = vand.u32 2147483647, %v1229
    %vm1255 = vcmp.eq.f32.partialorder %v1254, 8.507059e+37
    %v1256 = vand.u32 %v1229, 2147483648
    %v1257 = vor.u32 1.1754944e-38, %v1256
    %v1258 = vsel %vm1255, %v1257, %v1253
    %v1259 = vmul.f32 1.0, %v1258
    %v1260 = vmul.f32 %v207, %v1244
    %v1261 = vmul.f32 %v210, %v1259
    %1264 = vrot.lane.b32.xlu0 %v1260, 64
    %v1265 = vpop.permute.xlu0 %1264
    %1266 = vrot.lane.b32.xlu0 %v1261, 64
    %v1267 = vpop.permute.xlu0 %1266
    %v1270 = vmul.f32 %v1220, %v1265
    %v1271 = vmul.f32 %v1221, %v1267
    %v1272 = vld [vmem:[%s13] sm:$0xff]
    %v1273 = vld [vmem:[%s13 + $0x8] sm:$0xff]
    %v1274 = vld [vmem:[%s13 + $0x10] sm:$0xff]
    %v1275 = vld [vmem:[%s13 + $0x18] sm:$0xff]
    %v1276 = vld [vmem:[%s13 + $0x20] sm:$0xff]
    %v1277 = vld [vmem:[%s13 + $0x28] sm:$0xff]
    %v1278 = vld [vmem:[%s13 + $0x30] sm:$0xff]
    %v1279 = vld [vmem:[%s13 + $0x38] sm:$0xff]
    %v1280 = vld [vmem:[%s14] sm:$0x1]
    %v1282 = vperm.slane %v1280, 0
    %v1285 = vsel %vm339, %v1270, 0
    %v1288 = vsel %vm339, %v1271, 0
    %1290 = vmatpush.msra.mxu0 0.0
    %1291 = vmatpush.msra.mxu0 0.0
    %1292 = vmatpush.msra.mxu0 0.0
    %1293 = vmatpush.msra.mxu0 0.0
    %1294 = vmatpush.msra.mxu0 0.0
    %1295 = vmatpush.msra.mxu0 0.0
    %1296 = vmatpush.msra.mxu0 0.0
    %1297 = vmatpush.msra.mxu0 0.0
    %1298 = vmatpush.msra.mxu0 %v1279
    %1299 = vmatpush.msra.mxu0 %v1278
    %1300 = vmatpush.msra.mxu0 %v1277
    %1301 = vmatpush.msra.mxu0 %v1276
    %1302 = vmatpush.msra.mxu0 %v1275
    %1303 = vmatpush.msra.mxu0 %v1274
    %1304 = vmatpush.msra.mxu0 %v1273
    %1305 = vmatpush.msra.mxu0 %v1272
    %1306 = vmatmul.f32.gmra.mxu0 %v1285
    %v1307 = vpop.f32.mrf.mxu0
    %v1308 = vadd.f32 %v1282, %v1307
    %1309 = vmatmul.f32.gmra.mxu0 %v1288
    %v1310 = vpop.f32.mrf.mxu0
    %v1311 = vadd.f32 %v1282, %v1310
    %1312 = vdwg.mxu0
    %vm1313 = vcmask 39936
    %1314 = vst.msk [vmem:[%s15] sm:$0xff] %vm1313, %v1308
    %1315 = vst.msk [vmem:[%s15 + $0x8] sm:$0xff] %vm1313, %v1311
    // Predicated region
    $region78: #{tpu_custom_call.1} parent=1 // pred_check
      _
    $region79: #{tpu_custom_call.1} parent=1 // pred_check_branch
      %1317 = sbr.rel (0) target = $region81
    $region80: #{tpu_custom_call.1} parent=1 // pred_region
      _
    $region81: #{tpu_custom_call.1} parent=1 // pred_fallthru
      _
    // Predicated region
    $region82: #{tpu_custom_call.1} parent=1 // pred_check
      _
    $region83: #{tpu_custom_call.1} parent=1 // pred_check_branch
      %1319 = sbr.rel (0) target = $region85
    $region84: #{tpu_custom_call.1} parent=1 // pred_region
      _
    $region85: #{tpu_custom_call.1} parent=1 // pred_fallthru
      _
    %1320 = vsyncpa [#allocation3], 1
    %1321 = vsyncpa [#allocation5], 1
    %1322 = vsyncpa [#allocation8], 1

</llo_original>
